<compile_context>
chip_gen: v6e
topology: v6e:2x2x1
jax: 0.10.0
libtpu: 0.0.40
codegen_flags: <defaults>
</compile_context>

<pallas_src>
import jax
import jax.numpy as jnp
from jax.experimental import pallas as pl
from jax.experimental.pallas import tpu as pltpu

_H = 64        # fc1 hidden dim padded 50 -> 64 (zero weights/bias, numerically inert)
_LANES = 128   # lanes per x-parity half: (x//2)*10 + oc < 120, zero-padded to 128


# ------------------------------ fused kernel -------------------------------

def _fused_cnn_kernel(x_ref, m_ref, bc_ref, w1_ref, b1_ref, w2_ref, b2_ref, o_ref):
    """Whole forward pass for one tile of bt samples.

    x_ref : (1, 28, bt, 28)  raw pixels, [h, sample, w] (samples on sublanes)
    m_ref : (5, 28, 256)     banded conv weights, lane = (x%2)*128 + (x//2)*10 + oc
    bc_ref: (1, 128)         conv bias broadcast over lanes j*10 + oc
    w1_ref: (1536, _H)       fc1 weights, row = i*128 + j*10 + oc
    b1_ref: (1, _H), w2_ref: (_H, 10), b2_ref: (1, 10)
    o_ref : (bt, 10)         log-softmax outputs
    """
    bt = o_ref.shape[0]
    x = x_ref[0]                                        # (28, bt, 28)

    # ---- conv1: 5 stacked MXU matmuls (one per kernel row kh) ----------------
    # acc row y*bt + n, lane (x%2)*128 + (x//2)*10 + oc  ==  conv[n, oc, y, x] (pre-bias).
    acc = jnp.zeros((24 * bt, 256), jnp.float32)
    for kh in range(5):
        rows = x[kh:kh + 24].reshape(24 * bt, 28)       # free: leading slice + reshape
        acc = acc + jnp.dot(rows, m_ref[kh], preferred_element_type=jnp.float32)
    acc = acc.reshape(24, bt, 256)                      # [y, sample, lane] (free reshape)

    # ---- 2x2 max-pool + bias + ReLU  (pool-x = aligned lane halves,
    #      pool-y = adjacent leading rows; bias hoisted out of the max) --------
    bc = bc_ref[...]
    pieces = []
    for i in range(12):
        m = jnp.maximum(acc[2 * i], acc[2 * i + 1])               # (bt, 256) pool over y
        p = jnp.maximum(m[:, :_LANES], m[:, _LANES:])             # (bt, 128) pool over x
        pieces.append(jnp.maximum(p + bc, 0.0))                   # bias + ReLU
    f1 = jnp.concatenate(pieces, axis=1)                          # (bt, 1536)

    # ---- fc1: ONE fat MXU matmul + ReLU --------------------------------------
    h = jnp.dot(f1, w1_ref[...], preferred_element_type=jnp.float32)
    h = jnp.maximum(h + b1_ref[...], 0.0)                         # (bt, _H)

    # ---- fc2 + log_softmax ----------------------------------------------------
    logits = jnp.dot(h, w2_ref[...], preferred_element_type=jnp.float32) + b2_ref[...]
    z = logits - jnp.max(logits, axis=-1, keepdims=True)
    o_ref[...] = z - jnp.log(jnp.sum(jnp.exp(z), axis=-1, keepdims=True))


# ------------------------------- JAX glue ----------------------------------

def _prepare_weights(params):
    """One-time massaging of the PyTorch-shaped parameters into kernel layouts."""
    conv_w, conv_b, fc1_w, fc1_b, fc2_w, fc2_b = params
    w = conv_w.reshape(10, 5, 5).astype(jnp.float32)                     # [oc, kh, kw]

    # Banded conv matrix: M[kh, w_in, (x%2)*128 + (x//2)*10 + oc] = w[oc, kh, w_in - x].
    xs, win, kws = jnp.arange(24), jnp.arange(28), jnp.arange(5)
    sel = (win[None, :, None] == xs[:, None, None] + kws[None, None, :]).astype(jnp.float32)
    m = jnp.einsum('xwk,ohk->hwxo', sel, w)                              # (5, 28, 24, 10)
    m = m.reshape(5, 28, 12, 2, 10).transpose(0, 1, 3, 2, 4).reshape(5, 28, 2, 120)
    m = jnp.pad(m, ((0, 0), (0, 0), (0, 0), (0, 8))).reshape(5, 28, 256)

    bc = jnp.pad(jnp.tile(conv_b.astype(jnp.float32), 12), (0, 8)).reshape(1, 128)

    # fc1: PyTorch flatten index oc*144 + i*12 + j  ->  kernel K index i*128 + j*10 + oc.
    w1 = jnp.zeros((12, 128, _H), jnp.float32)
    w1 = w1.at[:, :120, :50].set(
        fc1_w.T.astype(jnp.float32).reshape(10, 12, 12, 50)
        .transpose(1, 2, 0, 3).reshape(12, 120, 50))
    w1 = w1.reshape(12 * 128, _H)
    b1 = jnp.zeros((1, _H), jnp.float32).at[:, :50].set(fc1_b.reshape(1, 50))
    w2 = jnp.zeros((_H, 10), jnp.float32).at[:50, :].set(fc2_w.T.astype(jnp.float32))
    b2 = fc2_b.reshape(1, 10).astype(jnp.float32)
    return m, bc, w1, b1, w2, b2


def _pick_bt(batch):
    """Samples per grid step: multiple of 8, <= 128, >= 2 grid steps when possible."""
    for cand in (128, 64, 32, 16):
        if batch >= 2 * cand:
            return cand
    return 8


def cnn_forward(x, params):
    B = x.shape[0]
    x = x.astype(jnp.float32).reshape(B, 28, 28)

    bt = _pick_bt(B)
    b_pad = pl.cdiv(B, bt) * bt
    if b_pad != B:
        x = jnp.pad(x, ((0, b_pad - B), (0, 0), (0, 0)))
    nblk = b_pad // bt

    # Put the sample index on the sublane axis: (nblk, 28, bt, 28) = [tile, h, sample, w].
    xt = x.reshape(nblk, bt, 28, 28).transpose(0, 2, 1, 3)

    m, bc, w1, b1, w2, b2 = _prepare_weights(params)

    out = pl.pallas_call(
        _fused_cnn_kernel,
        out_shape=jax.ShapeDtypeStruct((b_pad, 10), jnp.float32),
        grid=(nblk,),
        in_specs=[
            pl.BlockSpec((1, 28, bt, 28), lambda i: (i, 0, 0, 0)),  # raw pixels (per tile)
            pl.BlockSpec((5, 28, 256), lambda i: (0, 0, 0)),        # conv weights (resident)
            pl.BlockSpec((1, 128), lambda i: (0, 0)),               # conv bias    (resident)
            pl.BlockSpec((12 * 128, _H), lambda i: (0, 0)),         # fc1 weights  (resident)
            pl.BlockSpec((1, _H), lambda i: (0, 0)),                # fc1 bias     (resident)
            pl.BlockSpec((_H, 10), lambda i: (0, 0)),               # fc2 weights  (resident)
            pl.BlockSpec((1, 10), lambda i: (0, 0)),                # fc2 bias     (resident)
        ],
        out_specs=pl.BlockSpec((bt, 10), lambda i: (i, 0)),
        compiler_params=pltpu.CompilerParams(
            dimension_semantics=("parallel",)),                     # megacore-shard batch tiles
    )(xt, m, bc, w1, b1, w2, b2)
    return out[:B]


cnn_forward_jit = jax.jit(cnn_forward)


def init_params(key):
    """Deterministic synthetic parameters with the shapes from CNN.__init__."""
    ks = jax.random.split(key, 6)
    conv_w = jax.random.normal(ks[0], (10, 1, 5, 5), jnp.float32) * 0.2   # Conv2d(1, 10, 5)
    conv_b = jax.random.normal(ks[1], (10,), jnp.float32) * 0.1
    fc1_w = jax.random.normal(ks[2], (50, 1440), jnp.float32) * 0.02      # Linear(1440, 50)
    fc1_b = jax.random.normal(ks[3], (50,), jnp.float32) * 0.1
    fc2_w = jax.random.normal(ks[4], (10, 50), jnp.float32) * 0.1         # Linear(50, 10)
    fc2_b = jax.random.normal(ks[5], (10,), jnp.float32) * 0.1
    return conv_w, conv_b, fc1_w, fc1_b, fc2_w, fc2_b


def reference_forward(x, params):
    """Pure-JAX reference reproducing the PyTorch forward pass."""
    conv_w, conv_b, fc1_w, fc1_b, fc2_w, fc2_b = params
    B = x.shape[0]
    y = jax.lax.conv_general_dilated(
        x, conv_w, window_strides=(1, 1), padding="VALID",
        dimension_numbers=("NCHW", "OIHW", "NCHW"))
    y = jax.nn.relu(y + conv_b.reshape(1, 10, 1, 1))                 # (B, 10, 24, 24)
    y = y.reshape(B, 10, 12, 2, 12, 2).max(axis=(3, 5))              # (B, 10, 12, 12)
    f = y.reshape(B, 1440)
    h = jax.nn.relu(f @ fc1_w.T + fc1_b)
    logits = h @ fc2_w.T + fc2_b
    return jax.nn.log_softmax(logits, axis=1)


if __name__ == "__main__":
    key = jax.random.PRNGKey(0)
    kx, kp = jax.random.split(key)
    params = init_params(kp)

    # Small case (B=2): single grid step, batch padded 2 -> 8.
    x_small = jax.random.normal(kx, (2, 1, 28, 28), jnp.float32)
    out = jax.block_until_ready(cnn_forward_jit(x_small, params))
    ref = reference_forward(x_small, params)
    assert out.shape == (2, 10), out.shape
    assert bool(jnp.allclose(out, ref, atol=1e-2, rtol=1e-2)), "mismatch vs reference (B=2)"

    # Multi-step grid + batch padding (B=20 -> bt=8, 3 grid steps, 4 padded rows).
    x_big = jax.random.normal(jax.random.fold_in(kx, 1), (20, 1, 28, 28), jnp.float32)
    out_b = jax.block_until_ready(cnn_forward_jit(x_big, params))
    ref_b = reference_forward(x_big, params)
    assert out_b.shape == (20, 10), out_b.shape
    assert bool(jnp.allclose(out_b, ref_b, atol=1e-2, rtol=1e-2)), "mismatch vs reference (B=20)"

    print("KERNEL_OK")
</pallas_src>

<mosaic_0001>
module attributes {stable_mosaic.version = 11 : i64} {
  func.func @_fused_cnn_kernel(%arg0: i32, %arg1: memref<1x28x8x28xf32, #tpu.memory_space<vmem>>, %arg2: memref<5x28x256xf32, #tpu.memory_space<vmem>>, %arg3: memref<1x128xf32, #tpu.memory_space<vmem>>, %arg4: memref<1536x64xf32, #tpu.memory_space<vmem>>, %arg5: memref<1x64xf32, #tpu.memory_space<vmem>>, %arg6: memref<64x10xf32, #tpu.memory_space<vmem>>, %arg7: memref<1x10xf32, #tpu.memory_space<vmem>>, %arg8: memref<8x10xf32, #tpu.memory_space<vmem>>) attributes {dimension_semantics = [#tpu.dimension_semantics<parallel>], iteration_bounds = array<i64: 1>, scalar_prefetch = 0 : i64, scratch_operands = 0 : i64, tpu.core_type = #tpu.core_type<tc>, window_params = [{transform_indices = @transform_0, window_bounds = array<i64: 1, 28, 8, 28>}, {pipeline_mode = #tpu.pipeline_mode<synchronous>, transform_indices = @transform_1, window_bounds = array<i64: 5, 28, 256>}, {pipeline_mode = #tpu.pipeline_mode<synchronous>, transform_indices = @transform_2, window_bounds = array<i64: 1, 128>}, {pipeline_mode = #tpu.pipeline_mode<synchronous>, transform_indices = @transform_3, window_bounds = array<i64: 1536, 64>}, {pipeline_mode = #tpu.pipeline_mode<synchronous>, transform_indices = @transform_4, window_bounds = array<i64: 1, 64>}, {pipeline_mode = #tpu.pipeline_mode<synchronous>, transform_indices = @transform_5, window_bounds = array<i64: 64, 10>}, {pipeline_mode = #tpu.pipeline_mode<synchronous>, transform_indices = @transform_6, window_bounds = array<i64: 1, 10>}, {transform_indices = @transform_7, window_bounds = array<i64: 8, 10>}]} {
    %c0 = arith.constant 0 : index
    %c0_0 = arith.constant 0 : index
    %c0_1 = arith.constant 0 : index
    %c0_2 = arith.constant 0 : index
    %0 = vector.load %arg1[%c0, %c0_0, %c0_1, %c0_2] : memref<1x28x8x28xf32, #tpu.memory_space<vmem>>, vector<1x28x8x28xf32>
    %1 = vector.shape_cast %0 : vector<1x28x8x28xf32> to vector<28x8x28xf32>
    %cst = arith.constant 0.000000e+00 : f32
    %2 = vector.broadcast %cst : f32 to vector<192x256xf32>
    %3 = vector.extract_strided_slice %1 {offsets = [0, 0, 0], sizes = [24, 8, 28], strides = [1, 1, 1]} : vector<28x8x28xf32> to vector<24x8x28xf32>
    %4 = vector.shape_cast %3 : vector<24x8x28xf32> to vector<192x28xf32>
    %c0_3 = arith.constant 0 : index
    %c0_4 = arith.constant 0 : index
    %c0_5 = arith.constant 0 : index
    %5 = vector.load %arg2[%c0_3, %c0_4, %c0_5] : memref<5x28x256xf32, #tpu.memory_space<vmem>>, vector<1x28x256xf32>
    %6 = vector.shape_cast %5 : vector<1x28x256xf32> to vector<28x256xf32>
    %cst_6 = arith.constant dense<0.000000e+00> : vector<192x256xf32>
    %7 = tpu.matmul %4, %6, %cst_6 {dimension_numbers = #tpu.dot_dimension_numbers<[1], [0], [0], [1], [0, 0, 1, 1], [], []>} : vector<192x28xf32>, vector<28x256xf32>, vector<192x256xf32> -> vector<192x256xf32>
    %8 = arith.addf %2, %7 : vector<192x256xf32>
    %9 = vector.extract_strided_slice %1 {offsets = [1, 0, 0], sizes = [24, 8, 28], strides = [1, 1, 1]} : vector<28x8x28xf32> to vector<24x8x28xf32>
    %10 = vector.shape_cast %9 : vector<24x8x28xf32> to vector<192x28xf32>
    %c1 = arith.constant 1 : index
    %c0_7 = arith.constant 0 : index
    %c0_8 = arith.constant 0 : index
    %11 = vector.load %arg2[%c1, %c0_7, %c0_8] : memref<5x28x256xf32, #tpu.memory_space<vmem>>, vector<1x28x256xf32>
    %12 = vector.shape_cast %11 : vector<1x28x256xf32> to vector<28x256xf32>
    %cst_9 = arith.constant dense<0.000000e+00> : vector<192x256xf32>
    %13 = tpu.matmul %10, %12, %cst_9 {dimension_numbers = #tpu.dot_dimension_numbers<[1], [0], [0], [1], [0, 0, 1, 1], [], []>} : vector<192x28xf32>, vector<28x256xf32>, vector<192x256xf32> -> vector<192x256xf32>
    %14 = arith.addf %8, %13 : vector<192x256xf32>
    %15 = vector.extract_strided_slice %1 {offsets = [2, 0, 0], sizes = [24, 8, 28], strides = [1, 1, 1]} : vector<28x8x28xf32> to vector<24x8x28xf32>
    %16 = vector.shape_cast %15 : vector<24x8x28xf32> to vector<192x28xf32>
    %c2 = arith.constant 2 : index
    %c0_10 = arith.constant 0 : index
    %c0_11 = arith.constant 0 : index
    %17 = vector.load %arg2[%c2, %c0_10, %c0_11] : memref<5x28x256xf32, #tpu.memory_space<vmem>>, vector<1x28x256xf32>
    %18 = vector.shape_cast %17 : vector<1x28x256xf32> to vector<28x256xf32>
    %cst_12 = arith.constant dense<0.000000e+00> : vector<192x256xf32>
    %19 = tpu.matmul %16, %18, %cst_12 {dimension_numbers = #tpu.dot_dimension_numbers<[1], [0], [0], [1], [0, 0, 1, 1], [], []>} : vector<192x28xf32>, vector<28x256xf32>, vector<192x256xf32> -> vector<192x256xf32>
    %20 = arith.addf %14, %19 : vector<192x256xf32>
    %21 = vector.extract_strided_slice %1 {offsets = [3, 0, 0], sizes = [24, 8, 28], strides = [1, 1, 1]} : vector<28x8x28xf32> to vector<24x8x28xf32>
    %22 = vector.shape_cast %21 : vector<24x8x28xf32> to vector<192x28xf32>
    %c3 = arith.constant 3 : index
    %c0_13 = arith.constant 0 : index
    %c0_14 = arith.constant 0 : index
    %23 = vector.load %arg2[%c3, %c0_13, %c0_14] : memref<5x28x256xf32, #tpu.memory_space<vmem>>, vector<1x28x256xf32>
    %24 = vector.shape_cast %23 : vector<1x28x256xf32> to vector<28x256xf32>
    %cst_15 = arith.constant dense<0.000000e+00> : vector<192x256xf32>
    %25 = tpu.matmul %22, %24, %cst_15 {dimension_numbers = #tpu.dot_dimension_numbers<[1], [0], [0], [1], [0, 0, 1, 1], [], []>} : vector<192x28xf32>, vector<28x256xf32>, vector<192x256xf32> -> vector<192x256xf32>
    %26 = arith.addf %20, %25 : vector<192x256xf32>
    %27 = vector.extract_strided_slice %1 {offsets = [4, 0, 0], sizes = [24, 8, 28], strides = [1, 1, 1]} : vector<28x8x28xf32> to vector<24x8x28xf32>
    %28 = vector.shape_cast %27 : vector<24x8x28xf32> to vector<192x28xf32>
    %c4 = arith.constant 4 : index
    %c0_16 = arith.constant 0 : index
    %c0_17 = arith.constant 0 : index
    %29 = vector.load %arg2[%c4, %c0_16, %c0_17] : memref<5x28x256xf32, #tpu.memory_space<vmem>>, vector<1x28x256xf32>
    %30 = vector.shape_cast %29 : vector<1x28x256xf32> to vector<28x256xf32>
    %cst_18 = arith.constant dense<0.000000e+00> : vector<192x256xf32>
    %31 = tpu.matmul %28, %30, %cst_18 {dimension_numbers = #tpu.dot_dimension_numbers<[1], [0], [0], [1], [0, 0, 1, 1], [], []>} : vector<192x28xf32>, vector<28x256xf32>, vector<192x256xf32> -> vector<192x256xf32>
    %32 = arith.addf %26, %31 : vector<192x256xf32>
    %33 = vector.shape_cast %32 : vector<192x256xf32> to vector<24x8x256xf32>
    %c0_19 = arith.constant 0 : index
    %c0_20 = arith.constant 0 : index
    %34 = vector.load %arg3[%c0_19, %c0_20] : memref<1x128xf32, #tpu.memory_space<vmem>>, vector<1x128xf32>
    %35 = vector.extract_strided_slice %33 {offsets = [0, 0, 0], sizes = [1, 8, 256], strides = [1, 1, 1]} : vector<24x8x256xf32> to vector<1x8x256xf32>
    %36 = vector.shape_cast %35 : vector<1x8x256xf32> to vector<8x256xf32>
    %37 = vector.extract_strided_slice %33 {offsets = [1, 0, 0], sizes = [1, 8, 256], strides = [1, 1, 1]} : vector<24x8x256xf32> to vector<1x8x256xf32>
    %38 = vector.shape_cast %37 : vector<1x8x256xf32> to vector<8x256xf32>
    %39 = arith.maximumf %36, %38 : vector<8x256xf32>
    %40 = vector.extract_strided_slice %39 {offsets = [0, 0], sizes = [8, 128], strides = [1, 1]} : vector<8x256xf32> to vector<8x128xf32>
    %41 = vector.extract_strided_slice %39 {offsets = [0, 128], sizes = [8, 128], strides = [1, 1]} : vector<8x256xf32> to vector<8x128xf32>
    %42 = arith.maximumf %40, %41 : vector<8x128xf32>
    %43 = vector.broadcast %34 : vector<1x128xf32> to vector<8x128xf32>
    %44 = arith.addf %42, %43 : vector<8x128xf32>
    %cst_21 = arith.constant 0.000000e+00 : f32
    %45 = vector.broadcast %cst_21 : f32 to vector<8x128xf32>
    %46 = arith.maximumf %44, %45 : vector<8x128xf32>
    %47 = vector.extract_strided_slice %33 {offsets = [2, 0, 0], sizes = [1, 8, 256], strides = [1, 1, 1]} : vector<24x8x256xf32> to vector<1x8x256xf32>
    %48 = vector.shape_cast %47 : vector<1x8x256xf32> to vector<8x256xf32>
    %49 = vector.extract_strided_slice %33 {offsets = [3, 0, 0], sizes = [1, 8, 256], strides = [1, 1, 1]} : vector<24x8x256xf32> to vector<1x8x256xf32>
    %50 = vector.shape_cast %49 : vector<1x8x256xf32> to vector<8x256xf32>
    %51 = arith.maximumf %48, %50 : vector<8x256xf32>
    %52 = vector.extract_strided_slice %51 {offsets = [0, 0], sizes = [8, 128], strides = [1, 1]} : vector<8x256xf32> to vector<8x128xf32>
    %53 = vector.extract_strided_slice %51 {offsets = [0, 128], sizes = [8, 128], strides = [1, 1]} : vector<8x256xf32> to vector<8x128xf32>
    %54 = arith.maximumf %52, %53 : vector<8x128xf32>
    %55 = vector.broadcast %34 : vector<1x128xf32> to vector<8x128xf32>
    %56 = arith.addf %54, %55 : vector<8x128xf32>
    %cst_22 = arith.constant 0.000000e+00 : f32
    %57 = vector.broadcast %cst_22 : f32 to vector<8x128xf32>
    %58 = arith.maximumf %56, %57 : vector<8x128xf32>
    %59 = vector.extract_strided_slice %33 {offsets = [4, 0, 0], sizes = [1, 8, 256], strides = [1, 1, 1]} : vector<24x8x256xf32> to vector<1x8x256xf32>
    %60 = vector.shape_cast %59 : vector<1x8x256xf32> to vector<8x256xf32>
    %61 = vector.extract_strided_slice %33 {offsets = [5, 0, 0], sizes = [1, 8, 256], strides = [1, 1, 1]} : vector<24x8x256xf32> to vector<1x8x256xf32>
    %62 = vector.shape_cast %61 : vector<1x8x256xf32> to vector<8x256xf32>
    %63 = arith.maximumf %60, %62 : vector<8x256xf32>
    %64 = vector.extract_strided_slice %63 {offsets = [0, 0], sizes = [8, 128], strides = [1, 1]} : vector<8x256xf32> to vector<8x128xf32>
    %65 = vector.extract_strided_slice %63 {offsets = [0, 128], sizes = [8, 128], strides = [1, 1]} : vector<8x256xf32> to vector<8x128xf32>
    %66 = arith.maximumf %64, %65 : vector<8x128xf32>
    %67 = vector.broadcast %34 : vector<1x128xf32> to vector<8x128xf32>
    %68 = arith.addf %66, %67 : vector<8x128xf32>
    %cst_23 = arith.constant 0.000000e+00 : f32
    %69 = vector.broadcast %cst_23 : f32 to vector<8x128xf32>
    %70 = arith.maximumf %68, %69 : vector<8x128xf32>
    %71 = vector.extract_strided_slice %33 {offsets = [6, 0, 0], sizes = [1, 8, 256], strides = [1, 1, 1]} : vector<24x8x256xf32> to vector<1x8x256xf32>
    %72 = vector.shape_cast %71 : vector<1x8x256xf32> to vector<8x256xf32>
    %73 = vector.extract_strided_slice %33 {offsets = [7, 0, 0], sizes = [1, 8, 256], strides = [1, 1, 1]} : vector<24x8x256xf32> to vector<1x8x256xf32>
    %74 = vector.shape_cast %73 : vector<1x8x256xf32> to vector<8x256xf32>
    %75 = arith.maximumf %72, %74 : vector<8x256xf32>
    %76 = vector.extract_strided_slice %75 {offsets = [0, 0], sizes = [8, 128], strides = [1, 1]} : vector<8x256xf32> to vector<8x128xf32>
    %77 = vector.extract_strided_slice %75 {offsets = [0, 128], sizes = [8, 128], strides = [1, 1]} : vector<8x256xf32> to vector<8x128xf32>
    %78 = arith.maximumf %76, %77 : vector<8x128xf32>
    %79 = vector.broadcast %34 : vector<1x128xf32> to vector<8x128xf32>
    %80 = arith.addf %78, %79 : vector<8x128xf32>
    %cst_24 = arith.constant 0.000000e+00 : f32
    %81 = vector.broadcast %cst_24 : f32 to vector<8x128xf32>
    %82 = arith.maximumf %80, %81 : vector<8x128xf32>
    %83 = vector.extract_strided_slice %33 {offsets = [8, 0, 0], sizes = [1, 8, 256], strides = [1, 1, 1]} : vector<24x8x256xf32> to vector<1x8x256xf32>
    %84 = vector.shape_cast %83 : vector<1x8x256xf32> to vector<8x256xf32>
    %85 = vector.extract_strided_slice %33 {offsets = [9, 0, 0], sizes = [1, 8, 256], strides = [1, 1, 1]} : vector<24x8x256xf32> to vector<1x8x256xf32>
    %86 = vector.shape_cast %85 : vector<1x8x256xf32> to vector<8x256xf32>
    %87 = arith.maximumf %84, %86 : vector<8x256xf32>
    %88 = vector.extract_strided_slice %87 {offsets = [0, 0], sizes = [8, 128], strides = [1, 1]} : vector<8x256xf32> to vector<8x128xf32>
    %89 = vector.extract_strided_slice %87 {offsets = [0, 128], sizes = [8, 128], strides = [1, 1]} : vector<8x256xf32> to vector<8x128xf32>
    %90 = arith.maximumf %88, %89 : vector<8x128xf32>
    %91 = vector.broadcast %34 : vector<1x128xf32> to vector<8x128xf32>
    %92 = arith.addf %90, %91 : vector<8x128xf32>
    %cst_25 = arith.constant 0.000000e+00 : f32
    %93 = vector.broadcast %cst_25 : f32 to vector<8x128xf32>
    %94 = arith.maximumf %92, %93 : vector<8x128xf32>
    %95 = vector.extract_strided_slice %33 {offsets = [10, 0, 0], sizes = [1, 8, 256], strides = [1, 1, 1]} : vector<24x8x256xf32> to vector<1x8x256xf32>
    %96 = vector.shape_cast %95 : vector<1x8x256xf32> to vector<8x256xf32>
    %97 = vector.extract_strided_slice %33 {offsets = [11, 0, 0], sizes = [1, 8, 256], strides = [1, 1, 1]} : vector<24x8x256xf32> to vector<1x8x256xf32>
    %98 = vector.shape_cast %97 : vector<1x8x256xf32> to vector<8x256xf32>
    %99 = arith.maximumf %96, %98 : vector<8x256xf32>
    %100 = vector.extract_strided_slice %99 {offsets = [0, 0], sizes = [8, 128], strides = [1, 1]} : vector<8x256xf32> to vector<8x128xf32>
    %101 = vector.extract_strided_slice %99 {offsets = [0, 128], sizes = [8, 128], strides = [1, 1]} : vector<8x256xf32> to vector<8x128xf32>
    %102 = arith.maximumf %100, %101 : vector<8x128xf32>
    %103 = vector.broadcast %34 : vector<1x128xf32> to vector<8x128xf32>
    %104 = arith.addf %102, %103 : vector<8x128xf32>
    %cst_26 = arith.constant 0.000000e+00 : f32
    %105 = vector.broadcast %cst_26 : f32 to vector<8x128xf32>
    %106 = arith.maximumf %104, %105 : vector<8x128xf32>
    %107 = vector.extract_strided_slice %33 {offsets = [12, 0, 0], sizes = [1, 8, 256], strides = [1, 1, 1]} : vector<24x8x256xf32> to vector<1x8x256xf32>
    %108 = vector.shape_cast %107 : vector<1x8x256xf32> to vector<8x256xf32>
    %109 = vector.extract_strided_slice %33 {offsets = [13, 0, 0], sizes = [1, 8, 256], strides = [1, 1, 1]} : vector<24x8x256xf32> to vector<1x8x256xf32>
    %110 = vector.shape_cast %109 : vector<1x8x256xf32> to vector<8x256xf32>
    %111 = arith.maximumf %108, %110 : vector<8x256xf32>
    %112 = vector.extract_strided_slice %111 {offsets = [0, 0], sizes = [8, 128], strides = [1, 1]} : vector<8x256xf32> to vector<8x128xf32>
    %113 = vector.extract_strided_slice %111 {offsets = [0, 128], sizes = [8, 128], strides = [1, 1]} : vector<8x256xf32> to vector<8x128xf32>
    %114 = arith.maximumf %112, %113 : vector<8x128xf32>
    %115 = vector.broadcast %34 : vector<1x128xf32> to vector<8x128xf32>
    %116 = arith.addf %114, %115 : vector<8x128xf32>
    %cst_27 = arith.constant 0.000000e+00 : f32
    %117 = vector.broadcast %cst_27 : f32 to vector<8x128xf32>
    %118 = arith.maximumf %116, %117 : vector<8x128xf32>
    %119 = vector.extract_strided_slice %33 {offsets = [14, 0, 0], sizes = [1, 8, 256], strides = [1, 1, 1]} : vector<24x8x256xf32> to vector<1x8x256xf32>
    %120 = vector.shape_cast %119 : vector<1x8x256xf32> to vector<8x256xf32>
    %121 = vector.extract_strided_slice %33 {offsets = [15, 0, 0], sizes = [1, 8, 256], strides = [1, 1, 1]} : vector<24x8x256xf32> to vector<1x8x256xf32>
    %122 = vector.shape_cast %121 : vector<1x8x256xf32> to vector<8x256xf32>
    %123 = arith.maximumf %120, %122 : vector<8x256xf32>
    %124 = vector.extract_strided_slice %123 {offsets = [0, 0], sizes = [8, 128], strides = [1, 1]} : vector<8x256xf32> to vector<8x128xf32>
    %125 = vector.extract_strided_slice %123 {offsets = [0, 128], sizes = [8, 128], strides = [1, 1]} : vector<8x256xf32> to vector<8x128xf32>
    %126 = arith.maximumf %124, %125 : vector<8x128xf32>
    %127 = vector.broadcast %34 : vector<1x128xf32> to vector<8x128xf32>
    %128 = arith.addf %126, %127 : vector<8x128xf32>
    %cst_28 = arith.constant 0.000000e+00 : f32
    %129 = vector.broadcast %cst_28 : f32 to vector<8x128xf32>
    %130 = arith.maximumf %128, %129 : vector<8x128xf32>
    %131 = vector.extract_strided_slice %33 {offsets = [16, 0, 0], sizes = [1, 8, 256], strides = [1, 1, 1]} : vector<24x8x256xf32> to vector<1x8x256xf32>
    %132 = vector.shape_cast %131 : vector<1x8x256xf32> to vector<8x256xf32>
    %133 = vector.extract_strided_slice %33 {offsets = [17, 0, 0], sizes = [1, 8, 256], strides = [1, 1, 1]} : vector<24x8x256xf32> to vector<1x8x256xf32>
    %134 = vector.shape_cast %133 : vector<1x8x256xf32> to vector<8x256xf32>
    %135 = arith.maximumf %132, %134 : vector<8x256xf32>
    %136 = vector.extract_strided_slice %135 {offsets = [0, 0], sizes = [8, 128], strides = [1, 1]} : vector<8x256xf32> to vector<8x128xf32>
    %137 = vector.extract_strided_slice %135 {offsets = [0, 128], sizes = [8, 128], strides = [1, 1]} : vector<8x256xf32> to vector<8x128xf32>
    %138 = arith.maximumf %136, %137 : vector<8x128xf32>
    %139 = vector.broadcast %34 : vector<1x128xf32> to vector<8x128xf32>
    %140 = arith.addf %138, %139 : vector<8x128xf32>
    %cst_29 = arith.constant 0.000000e+00 : f32
    %141 = vector.broadcast %cst_29 : f32 to vector<8x128xf32>
    %142 = arith.maximumf %140, %141 : vector<8x128xf32>
    %143 = vector.extract_strided_slice %33 {offsets = [18, 0, 0], sizes = [1, 8, 256], strides = [1, 1, 1]} : vector<24x8x256xf32> to vector<1x8x256xf32>
    %144 = vector.shape_cast %143 : vector<1x8x256xf32> to vector<8x256xf32>
    %145 = vector.extract_strided_slice %33 {offsets = [19, 0, 0], sizes = [1, 8, 256], strides = [1, 1, 1]} : vector<24x8x256xf32> to vector<1x8x256xf32>
    %146 = vector.shape_cast %145 : vector<1x8x256xf32> to vector<8x256xf32>
    %147 = arith.maximumf %144, %146 : vector<8x256xf32>
    %148 = vector.extract_strided_slice %147 {offsets = [0, 0], sizes = [8, 128], strides = [1, 1]} : vector<8x256xf32> to vector<8x128xf32>
    %149 = vector.extract_strided_slice %147 {offsets = [0, 128], sizes = [8, 128], strides = [1, 1]} : vector<8x256xf32> to vector<8x128xf32>
    %150 = arith.maximumf %148, %149 : vector<8x128xf32>
    %151 = vector.broadcast %34 : vector<1x128xf32> to vector<8x128xf32>
    %152 = arith.addf %150, %151 : vector<8x128xf32>
    %cst_30 = arith.constant 0.000000e+00 : f32
    %153 = vector.broadcast %cst_30 : f32 to vector<8x128xf32>
    %154 = arith.maximumf %152, %153 : vector<8x128xf32>
    %155 = vector.extract_strided_slice %33 {offsets = [20, 0, 0], sizes = [1, 8, 256], strides = [1, 1, 1]} : vector<24x8x256xf32> to vector<1x8x256xf32>
    %156 = vector.shape_cast %155 : vector<1x8x256xf32> to vector<8x256xf32>
    %157 = vector.extract_strided_slice %33 {offsets = [21, 0, 0], sizes = [1, 8, 256], strides = [1, 1, 1]} : vector<24x8x256xf32> to vector<1x8x256xf32>
    %158 = vector.shape_cast %157 : vector<1x8x256xf32> to vector<8x256xf32>
    %159 = arith.maximumf %156, %158 : vector<8x256xf32>
    %160 = vector.extract_strided_slice %159 {offsets = [0, 0], sizes = [8, 128], strides = [1, 1]} : vector<8x256xf32> to vector<8x128xf32>
    %161 = vector.extract_strided_slice %159 {offsets = [0, 128], sizes = [8, 128], strides = [1, 1]} : vector<8x256xf32> to vector<8x128xf32>
    %162 = arith.maximumf %160, %161 : vector<8x128xf32>
    %163 = vector.broadcast %34 : vector<1x128xf32> to vector<8x128xf32>
    %164 = arith.addf %162, %163 : vector<8x128xf32>
    %cst_31 = arith.constant 0.000000e+00 : f32
    %165 = vector.broadcast %cst_31 : f32 to vector<8x128xf32>
    %166 = arith.maximumf %164, %165 : vector<8x128xf32>
    %167 = vector.extract_strided_slice %33 {offsets = [22, 0, 0], sizes = [1, 8, 256], strides = [1, 1, 1]} : vector<24x8x256xf32> to vector<1x8x256xf32>
    %168 = vector.shape_cast %167 : vector<1x8x256xf32> to vector<8x256xf32>
    %169 = vector.extract_strided_slice %33 {offsets = [23, 0, 0], sizes = [1, 8, 256], strides = [1, 1, 1]} : vector<24x8x256xf32> to vector<1x8x256xf32>
    %170 = vector.shape_cast %169 : vector<1x8x256xf32> to vector<8x256xf32>
    %171 = arith.maximumf %168, %170 : vector<8x256xf32>
    %172 = vector.extract_strided_slice %171 {offsets = [0, 0], sizes = [8, 128], strides = [1, 1]} : vector<8x256xf32> to vector<8x128xf32>
    %173 = vector.extract_strided_slice %171 {offsets = [0, 128], sizes = [8, 128], strides = [1, 1]} : vector<8x256xf32> to vector<8x128xf32>
    %174 = arith.maximumf %172, %173 : vector<8x128xf32>
    %175 = vector.broadcast %34 : vector<1x128xf32> to vector<8x128xf32>
    %176 = arith.addf %174, %175 : vector<8x128xf32>
    %cst_32 = arith.constant 0.000000e+00 : f32
    %177 = vector.broadcast %cst_32 : f32 to vector<8x128xf32>
    %178 = arith.maximumf %176, %177 : vector<8x128xf32>
    %179 = tpu.concatenate %46, %58, %70, %82, %94, %106, %118, %130, %142, %154, %166, %178 in 1 : vector<8x128xf32>, vector<8x128xf32>, vector<8x128xf32>, vector<8x128xf32>, vector<8x128xf32>, vector<8x128xf32>, vector<8x128xf32>, vector<8x128xf32>, vector<8x128xf32>, vector<8x128xf32>, vector<8x128xf32>, vector<8x128xf32> -> vector<8x1536xf32>
    %c0_33 = arith.constant 0 : index
    %c0_34 = arith.constant 0 : index
    %180 = vector.load %arg4[%c0_33, %c0_34] : memref<1536x64xf32, #tpu.memory_space<vmem>>, vector<1536x64xf32>
    %cst_35 = arith.constant dense<0.000000e+00> : vector<8x64xf32>
    %181 = tpu.matmul %179, %180, %cst_35 {dimension_numbers = #tpu.dot_dimension_numbers<[1], [0], [0], [1], [0, 0, 1, 1], [], []>} : vector<8x1536xf32>, vector<1536x64xf32>, vector<8x64xf32> -> vector<8x64xf32>
    %c0_36 = arith.constant 0 : index
    %c0_37 = arith.constant 0 : index
    %182 = vector.load %arg5[%c0_36, %c0_37] : memref<1x64xf32, #tpu.memory_space<vmem>>, vector<1x64xf32>
    %183 = vector.broadcast %182 : vector<1x64xf32> to vector<8x64xf32>
    %184 = arith.addf %181, %183 : vector<8x64xf32>
    %cst_38 = arith.constant 0.000000e+00 : f32
    %185 = vector.broadcast %cst_38 : f32 to vector<8x64xf32>
    %186 = arith.maximumf %184, %185 : vector<8x64xf32>
    %c0_39 = arith.constant 0 : index
    %c0_40 = arith.constant 0 : index
    %187 = vector.load %arg6[%c0_39, %c0_40] : memref<64x10xf32, #tpu.memory_space<vmem>>, vector<64x10xf32>
    %cst_41 = arith.constant dense<0.000000e+00> : vector<8x10xf32>
    %188 = tpu.matmul %186, %187, %cst_41 {dimension_numbers = #tpu.dot_dimension_numbers<[1], [0], [0], [1], [0, 0, 1, 1], [], []>} : vector<8x64xf32>, vector<64x10xf32>, vector<8x10xf32> -> vector<8x10xf32>
    %c0_42 = arith.constant 0 : index
    %c0_43 = arith.constant 0 : index
    %189 = vector.load %arg7[%c0_42, %c0_43] : memref<1x10xf32, #tpu.memory_space<vmem>>, vector<1x10xf32>
    %190 = vector.broadcast %189 : vector<1x10xf32> to vector<8x10xf32>
    %191 = arith.addf %188, %190 : vector<8x10xf32>
    %cst_44 = arith.constant dense<0xFF800000> : vector<8xf32>
    %192 = vector.multi_reduction <maximumf>, %191, %cst_44 [1] : vector<8x10xf32> to vector<8xf32>
    %193 = vector.shape_cast %192 : vector<8xf32> to vector<8x1xf32>
    %194 = vector.broadcast %193 : vector<8x1xf32> to vector<8x10xf32>
    %195 = arith.subf %191, %194 : vector<8x10xf32>
    %196 = math.exp %195 : vector<8x10xf32>
    %cst_45 = arith.constant dense<0.000000e+00> : vector<8xf32>
    %197 = vector.multi_reduction <add>, %196, %cst_45 [1] : vector<8x10xf32> to vector<8xf32>
    %198 = vector.shape_cast %197 : vector<8xf32> to vector<8x1xf32>
    %199 = math.log %198 : vector<8x1xf32>
    %200 = vector.broadcast %199 : vector<8x1xf32> to vector<8x10xf32>
    %201 = arith.subf %195, %200 : vector<8x10xf32>
    %c0_46 = arith.constant 0 : index
    %c0_47 = arith.constant 0 : index
    %202 = vector.load %arg8[%c0_46, %c0_47] : memref<8x10xf32, #tpu.memory_space<vmem>>, vector<8x10xf32>
    tpu.vector_store %arg8[%c0_46, %c0_47], %201 {strides = array<i32>} : memref<8x10xf32, #tpu.memory_space<vmem>>, vector<8x10xf32>,
    return
  }
  func.func @transform_0(%arg0: i32) -> (i32, i32, i32, i32) {
    %c0_i32 = arith.constant 0 : i32
    %c0_i32_0 = arith.constant 0 : i32
    %c0_i32_1 = arith.constant 0 : i32
    %c0_i32_2 = arith.constant 0 : i32
    return %arg0, %c0_i32, %c0_i32_0, %c0_i32_1 : i32, i32, i32, i32
  }
  func.func @transform_1(%arg0: i32) -> (i32, i32, i32) {
    %c0_i32 = arith.constant 0 : i32
    %c0_i32_0 = arith.constant 0 : i32
    %c0_i32_1 = arith.constant 0 : i32
    %c0_i32_2 = arith.constant 0 : i32
    return %c0_i32, %c0_i32_0, %c0_i32_1 : i32, i32, i32
  }
  func.func @transform_2(%arg0: i32) -> (i32, i32) {
    %c0_i32 = arith.constant 0 : i32
    %c0_i32_0 = arith.constant 0 : i32
    %c0_i32_1 = arith.constant 0 : i32
    return %c0_i32, %c0_i32_0 : i32, i32
  }
  func.func @transform_3(%arg0: i32) -> (i32, i32) {
    %c0_i32 = arith.constant 0 : i32
    %c0_i32_0 = arith.constant 0 : i32
    %c0_i32_1 = arith.constant 0 : i32
    return %c0_i32, %c0_i32_0 : i32, i32
  }
  func.func @transform_4(%arg0: i32) -> (i32, i32) {
    %c0_i32 = arith.constant 0 : i32
    %c0_i32_0 = arith.constant 0 : i32
    %c0_i32_1 = arith.constant 0 : i32
    return %c0_i32, %c0_i32_0 : i32, i32
  }
  func.func @transform_5(%arg0: i32) -> (i32, i32) {
    %c0_i32 = arith.constant 0 : i32
    %c0_i32_0 = arith.constant 0 : i32
    %c0_i32_1 = arith.constant 0 : i32
    return %c0_i32, %c0_i32_0 : i32, i32
  }
  func.func @transform_6(%arg0: i32) -> (i32, i32) {
    %c0_i32 = arith.constant 0 : i32
    %c0_i32_0 = arith.constant 0 : i32
    %c0_i32_1 = arith.constant 0 : i32
    return %c0_i32, %c0_i32_0 : i32, i32
  }
  func.func @transform_7(%arg0: i32) -> (i32, i32) {
    %c0_i32 = arith.constant 0 : i32
    %c0_i32_0 = arith.constant 0 : i32
    return %arg0, %c0_i32 : i32, i32
  }
}

</mosaic_0001>

<llo_original>
// kernel: tile.8
$region0: #{tile.8}
  #allocation0 [shape = 's32[1]{0}', space=sflag, size = 0x4, scoped, tag = 'scoped memory for tile.8']
  %s0 = inlined_call_operand.vmem [shape: f32[10], index: 0, kind: input, shape index: {}]
  %s1 = inlined_call_operand.vmem [shape: f32[12,10], index: 1, kind: output, shape index: {}]
  // Predicated region
  $region2: #{tile.8} parent=0 // pred_check
    _
  $region3: #{tile.8} parent=0 // pred_check_branch
    %3 = sbr.rel (0) target = $region5
  $region4: #{tile.8} parent=0 // pred_region
    _
  $region5: #{tile.8} parent=0 // pred_fallthru
    _
  %v4 = vld [vmem:[%s0] ss:$0 sm:$0xff]
  %5 = vst [vmem:[%s1] sm:$0xff] %v4
  %s6 = scalar_lea.vmem %s1, 8
  %7 = vst [vmem:[%s6] sm:$0xff] %v4

// kernel: tile.9
$region0: #{tile.9}
  %s0 = inlined_call_operand.vmem [shape: f32[12,10], index: 0, kind: input, shape index: {}]
  %s1 = inlined_call_operand.vmem [shape: f32[120], index: 1, kind: output, shape index: {}]
  $region1: #{tile.9} parent=0
    #allocation0 [shape = 'u8[4096]{0}', space=vmem, size = 0x1000, scoped, tag = 'scoped mem for output reshape']
    %v2 = vld [vmem:[%s0] sm:$0x1]
    %vm3 = vcmask 80896
    %4 = vst.msk [vmem:[#allocation0] sm:$0x1] %vm3, %v2
    %s5 = scalar_lea.vmem %s0, 11
    %v6 = vld [vmem:[%s5] sm:$0x1]
    %7 = vrot.lane.b32.xlu0 %v6, 110
    %v8 = vpop.permute.xlu0 %7
    %vm9 = vcmask 982896
    %10 = vst.msk [vmem:[#allocation0] sm:$0x1] %vm9, %v8
    %s11 = scalar_lea.vmem %s0, 10
    %v12 = vld [vmem:[%s11] sm:$0x1]
    %13 = vrot.lane.b32.xlu0 %v12, 100
    %v14 = vpop.permute.xlu0 %13
    %vm15 = vcmask 900896
    %16 = vst.msk [vmem:[#allocation0] sm:$0x1] %vm15, %v14
    %s17 = scalar_lea.vmem %s0, 9
    %v18 = vld [vmem:[%s17] sm:$0x1]
    %19 = vrot.lane.b32.xlu0 %v18, 90
    %v20 = vpop.permute.xlu0 %19
    %vm21 = vcmask 818896
    %22 = vst.msk [vmem:[#allocation0] sm:$0x1] %vm21, %v20
    %s23 = scalar_lea.vmem %s0, 8
    %v24 = vld [vmem:[%s23] sm:$0x1]
    %25 = vrot.lane.b32.xlu0 %v24, 80
    %v26 = vpop.permute.xlu0 %25
    %vm27 = vcmask 736896
    %28 = vst.msk [vmem:[#allocation0] sm:$0x1] %vm27, %v26
    %s29 = scalar_lea.vmem %s0, 7
    %v30 = vld [vmem:[%s29] sm:$0x1]
    %31 = vrot.lane.b32.xlu0 %v30, 70
    %v32 = vpop.permute.xlu0 %31
    %vm33 = vcmask 654896
    %34 = vst.msk [vmem:[#allocation0] sm:$0x1] %vm33, %v32
    %s35 = scalar_lea.vmem %s0, 6
    %v36 = vld [vmem:[%s35] sm:$0x1]
    %37 = vrot.lane.b32.xlu0 %v36, 60
    %v38 = vpop.permute.xlu0 %37
    %vm39 = vcmask 572896
    %40 = vst.msk [vmem:[#allocation0] sm:$0x1] %vm39, %v38
    %s41 = scalar_lea.vmem %s0, 5
    %v42 = vld [vmem:[%s41] sm:$0x1]
    %43 = vrot.lane.b32.xlu0 %v42, 50
    %v44 = vpop.permute.xlu0 %43
    %vm45 = vcmask 490896
    %46 = vst.msk [vmem:[#allocation0] sm:$0x1] %vm45, %v44
    %s47 = scalar_lea.vmem %s0, 4
    %v48 = vld [vmem:[%s47] sm:$0x1]
    %49 = vrot.lane.b32.xlu0 %v48, 40
    %v50 = vpop.permute.xlu0 %49
    %vm51 = vcmask 408896
    %52 = vst.msk [vmem:[#allocation0] sm:$0x1] %vm51, %v50
    %s53 = scalar_lea.vmem %s0, 3
    %v54 = vld [vmem:[%s53] sm:$0x1]
    %55 = vrot.lane.b32.xlu0 %v54, 30
    %v56 = vpop.permute.xlu0 %55
    %vm57 = vcmask 326896
    %58 = vst.msk [vmem:[#allocation0] sm:$0x1] %vm57, %v56
    %s59 = scalar_lea.vmem %s0, 2
    %v60 = vld [vmem:[%s59] sm:$0x1]
    %61 = vrot.lane.b32.xlu0 %v60, 20
    %v62 = vpop.permute.xlu0 %61
    %vm63 = vcmask 244896
    %64 = vst.msk [vmem:[#allocation0] sm:$0x1] %vm63, %v62
    %s65 = scalar_lea.vmem %s0, 1
    %v66 = vld [vmem:[%s65] sm:$0x1]
    %67 = vrot.lane.b32.xlu0 %v66, 10
    %v68 = vpop.permute.xlu0 %67
    %vm69 = vcmask 162896
    %70 = vst.msk [vmem:[#allocation0] sm:$0x1] %vm69, %v68
    %s72 = sshll.u32 1, 1
    %s73 = ssub.s32 %s72, 1
    %v75 = vld [vmem:[#allocation0] sm:%s73]
    %s76 = sshll.u32 1, 1
    %s77 = ssub.s32 %s76, 1
    %78 = vst [vmem:[%s1] sm:%s77] %v75

// kernel: cnn_forward.1
$region0: #{cnn_forward.1}
  #allocation0 [shape = 'u32[]', space=smem, size = 0x4, offset = 0x4, fixed_abs, tag = 'smem constant byte address 0x4 - core index']
  #allocation1 [shape = 'u32[144,128]{1,0:T(1,128)}', space=vmem, size = 0x12000, scoped, tag = 'internal scratch']
  %s0 = inlined_call_operand.vmem [shape: f32[1,28,8,28], index: 0, kind: input, shape index: {}]
  %s1 = inlined_call_operand.vmem [shape: f32[5,28,256], index: 1, kind: input, shape index: {}]
  %s2 = inlined_call_operand.vmem [shape: f32[1,128], index: 2, kind: input, shape index: {}]
  %s3 = inlined_call_operand.vmem [shape: f32[1536,64], index: 3, kind: input, shape index: {}]
  %s4 = inlined_call_operand.vmem [shape: f32[1,64], index: 4, kind: input, shape index: {}]
  %s5 = inlined_call_operand.vmem [shape: f32[64,10], index: 5, kind: input, shape index: {}]
  %s6 = inlined_call_operand.vmem [shape: f32[1,10], index: 6, kind: input, shape index: {}]
  %s7 = inlined_call_operand.vmem [shape: f32[8,10], index: 7, kind: output, shape index: {}]
  %s8 = sld [smem:[#allocation0]]
  $region38: #{cnn_forward.1} parent=0
    _
  %s10 = ssub.s32 1, %s8
  %s11 = scalar_select 0, %s10, %s8
  // Predicated region
  $region2: #{cnn_forward.1} parent=0 // pred_check
    _
  $region3: #{cnn_forward.1} parent=0 // pred_check_branch
    %13 = sbr.rel (0) target = $region5
  $region4: #{cnn_forward.1} parent=0 // pred_region
    _
  $region5: #{cnn_forward.1} parent=0 // pred_fallthru
    _
  // Predicated region
  $region6: #{cnn_forward.1} parent=0 // pred_check
    _
  $region7: #{cnn_forward.1} parent=0 // pred_check_branch
    %15 = sbr.rel (0) target = $region9
  $region8: #{cnn_forward.1} parent=0 // pred_region
    _
  $region9: #{cnn_forward.1} parent=0 // pred_fallthru
    _
  // Predicated region
  $region10: #{cnn_forward.1} parent=0 // pred_check
    _
  $region11: #{cnn_forward.1} parent=0 // pred_check_branch
    %17 = sbr.rel (0) target = $region13
  $region12: #{cnn_forward.1} parent=0 // pred_region
    _
  $region13: #{cnn_forward.1} parent=0 // pred_fallthru
    _
  // Predicated region
  $region14: #{cnn_forward.1} parent=0 // pred_check
    _
  $region15: #{cnn_forward.1} parent=0 // pred_check_branch
    %19 = sbr.rel (0) target = $region17
  $region16: #{cnn_forward.1} parent=0 // pred_region
    _
  $region17: #{cnn_forward.1} parent=0 // pred_fallthru
    _
  // Predicated region
  $region18: #{cnn_forward.1} parent=0 // pred_check
    _
  $region19: #{cnn_forward.1} parent=0 // pred_check_branch
    %21 = sbr.rel (0) target = $region21
  $region20: #{cnn_forward.1} parent=0 // pred_region
    _
  $region21: #{cnn_forward.1} parent=0 // pred_fallthru
    _
  // Predicated region
  $region22: #{cnn_forward.1} parent=0 // pred_check
    _
  $region23: #{cnn_forward.1} parent=0 // pred_check_branch
    %23 = sbr.rel (0) target = $region25
  $region24: #{cnn_forward.1} parent=0 // pred_region
    _
  $region25: #{cnn_forward.1} parent=0 // pred_fallthru
    _
  // Predicated region
  $region26: #{cnn_forward.1} parent=0 // pred_check
    _
  $region27: #{cnn_forward.1} parent=0 // pred_check_branch
    %25 = sbr.rel (0) target = $region29
  $region28: #{cnn_forward.1} parent=0 // pred_region
    _
  $region29: #{cnn_forward.1} parent=0 // pred_fallthru
    _
  %v26 = vld [vmem:[%s0] sm:$0xff]
  %v27 = vld [vmem:[%s0 + $0x8] sm:$0xff]
  %v28 = vld [vmem:[%s0 + $0x10] sm:$0xff]
  %v29 = vld [vmem:[%s0 + $0x18] sm:$0xff]
  %v30 = vld [vmem:[%s0 + $0x20] sm:$0xff]
  %v31 = vld [vmem:[%s0 + $0x28] sm:$0xff]
  %v32 = vld [vmem:[%s0 + $0x30] sm:$0xff]
  %v33 = vld [vmem:[%s0 + $0x38] sm:$0xff]
  %v34 = vld [vmem:[%s0 + $0x40] sm:$0xff]
  %v35 = vld [vmem:[%s0 + $0x48] sm:$0xff]
  %v36 = vld [vmem:[%s0 + $0x50] sm:$0xff]
  %v37 = vld [vmem:[%s0 + $0x58] sm:$0xff]
  %v38 = vld [vmem:[%s0 + $0x60] sm:$0xff]
  %v39 = vld [vmem:[%s0 + $0x68] sm:$0xff]
  %v40 = vld [vmem:[%s0 + $0x70] sm:$0xff]
  %v41 = vld [vmem:[%s0 + $0x78] sm:$0xff]
  %v42 = vld [vmem:[%s0 + $0x80] sm:$0xff]
  %v43 = vld [vmem:[%s0 + $0x88] sm:$0xff]
  %v44 = vld [vmem:[%s0 + $0x90] sm:$0xff]
  %v45 = vld [vmem:[%s0 + $0x98] sm:$0xff]
  %v46 = vld [vmem:[%s0 + $0xa0] sm:$0xff]
  %v47 = vld [vmem:[%s0 + $0xa8] sm:$0xff]
  %v48 = vld [vmem:[%s0 + $0xb0] sm:$0xff]
  %v49 = vld [vmem:[%s0 + $0xb8] sm:$0xff]
  %v50 = vld [vmem:[%s0 + $0xc0] sm:$0xff]
  %v51 = vld [vmem:[%s0 + $0xc8] sm:$0xff]
  %v52 = vld [vmem:[%s0 + $0xd0] sm:$0xff]
  %v53 = vld [vmem:[%s0 + $0xd8] sm:$0xff]
  %v54 = vld [vmem:[%s1] sm:$0xff]
  %v55 = vld [vmem:[%s1 + $0x8] sm:$0xff]
  %v56 = vld [vmem:[%s1 + $0x10] sm:$0xff]
  %v57 = vld [vmem:[%s1 + $0x18] sm:$0xff]
  %v58 = vld [vmem:[%s1 + $0x20] sm:$0xff]
  %v59 = vld [vmem:[%s1 + $0x28] sm:$0xff]
  %v60 = vld [vmem:[%s1 + $0x30] sm:$0xf]
  %v61 = vld [vmem:[%s1 + $0x38] sm:$0xf]
  %s62 = scalar_lea.vmem %s1, 64
  %v63 = vld [vmem:[%s62] sm:$0xff]
  %v64 = vld [vmem:[%s62 + $0x8] sm:$0xff]
  %v65 = vld [vmem:[%s62 + $0x10] sm:$0xff]
  %v66 = vld [vmem:[%s62 + $0x18] sm:$0xff]
  %v67 = vld [vmem:[%s62 + $0x20] sm:$0xff]
  %v68 = vld [vmem:[%s62 + $0x28] sm:$0xff]
  %v69 = vld [vmem:[%s62 + $0x30] sm:$0xf]
  %v70 = vld [vmem:[%s62 + $0x38] sm:$0xf]
  %vm71 = vcmask 228352
  %v73 = vsel %vm71, %v27, 0
  %v76 = vsel %vm71, %v28, 0
  %v79 = vsel %vm71, %v29, 0
  %v82 = vsel %vm71, %v30, 0
  %v85 = vsel %vm71, %v31, 0
  %v88 = vsel %vm71, %v32, 0
  %v91 = vsel %vm71, %v33, 0
  %v94 = vsel %vm71, %v34, 0
  %v97 = vsel %vm71, %v35, 0
  %v100 = vsel %vm71, %v36, 0
  %v103 = vsel %vm71, %v37, 0
  %v106 = vsel %vm71, %v38, 0
  %v109 = vsel %vm71, %v39, 0
  %v112 = vsel %vm71, %v40, 0
  %v115 = vsel %vm71, %v41, 0
  %v118 = vsel %vm71, %v42, 0
  %v121 = vsel %vm71, %v43, 0
  %v124 = vsel %vm71, %v44, 0
  %v127 = vsel %vm71, %v45, 0
  %v130 = vsel %vm71, %v46, 0
  %v133 = vsel %vm71, %v47, 0
  %v136 = vsel %vm71, %v48, 0
  %v139 = vsel %vm71, %v49, 0
  %v142 = vsel %vm71, %v50, 0
  %vm144 = vcmask 1043456
  %v146 = vsel %vm144, %v69, 0
  %v149 = vsel %vm144, %v70, 0
  %151 = vmatprep.subr.mxu0 0.0
  %152 = vmatpush1.msra.mxu0 0.0
  %153 = vmatprep.subr.mxu0 0.0
  %154 = vmatpush1.msra.mxu0 0.0
  %155 = vmatprep.subr.mxu0 0.0
  %156 = vmatpush1.msra.mxu0 0.0
  %157 = vmatprep.subr.mxu0 0.0
  %158 = vmatpush1.msra.mxu0 0.0
  %159 = vmatprep.subr.mxu0 0.0
  %160 = vmatpush1.msra.mxu0 0.0
  %161 = vmatprep.subr.mxu0 0.0
  %162 = vmatpush1.msra.mxu0 0.0
  %163 = vmatprep.subr.mxu0 0.0
  %164 = vmatpush1.msra.mxu0 0.0
  %165 = vmatprep.subr.mxu0 0.0
  %166 = vmatpush1.msra.mxu0 0.0
  %167 = vmatprep.subr.mxu0 0.0
  %168 = vmatpush1.msra.mxu0 0.0
  %169 = vmatprep.subr.mxu0 0.0
  %170 = vmatpush1.msra.mxu0 0.0
  %171 = vmatprep.subr.mxu0 0.0
  %172 = vmatpush1.msra.mxu0 0.0
  %173 = vmatprep.subr.mxu0 0.0
  %174 = vmatpush1.msra.mxu0 0.0
  %175 = vmatprep.subr.mxu0 %v149
  %176 = vmatpush1.msra.mxu0 %v146
  %177 = vmatprep.subr.mxu0 %v68
  %178 = vmatpush1.msra.mxu0 %v67
  %179 = vmatprep.subr.mxu0 %v66
  %180 = vmatpush1.msra.mxu0 %v65
  %181 = vmatprep.subr.mxu0 %v64
  %182 = vmatpush1.msra.mxu0 %v63
  %183 = vmatprep.subr.mxu0 0.0
  %184 = vmatpush2.msra.mxu0 0.0
  %185 = vmatprep.subr.mxu0 0.0
  %186 = vmatpush2.msra.mxu0 0.0
  %187 = vmatprep.subr.mxu0 0.0
  %188 = vmatpush2.msra.mxu0 0.0
  %189 = vmatprep.subr.mxu0 0.0
  %190 = vmatpush2.msra.mxu0 0.0
  %191 = vmatprep.subr.mxu0 0.0
  %192 = vmatpush2.msra.mxu0 0.0
  %193 = vmatprep.subr.mxu0 0.0
  %194 = vmatpush2.msra.mxu0 0.0
  %195 = vmatprep.subr.mxu0 0.0
  %196 = vmatpush2.msra.mxu0 0.0
  %197 = vmatprep.subr.mxu0 0.0
  %198 = vmatpush2.msra.mxu0 0.0
  %199 = vmatprep.subr.mxu0 0.0
  %200 = vmatpush2.msra.mxu0 0.0
  %201 = vmatprep.subr.mxu0 0.0
  %202 = vmatpush2.msra.mxu0 0.0
  %203 = vmatprep.subr.mxu0 0.0
  %204 = vmatpush2.msra.mxu0 0.0
  %205 = vmatprep.subr.mxu0 0.0
  %206 = vmatpush2.msra.mxu0 0.0
  %207 = vmatprep.subr.mxu0 0.0
  %208 = vmatpush2.msra.mxu0 0.0
  %209 = vmatprep.subr.mxu0 0.0
  %210 = vmatpush2.msra.mxu0 0.0
  %211 = vmatprep.subr.mxu0 0.0
  %212 = vmatpush2.msra.mxu0 0.0
  %213 = vmatprep.subr.mxu0 0.0
  %214 = vmatpush2.msra.mxu0 0.0
  %215 = vmatprep.mubr.f32.mxu0 0.0
  %216 = vmatmul.mubr.f32.gmra.mxu0 %v73
  %v217 = vpop.f32.mrf.mxu0
  %v218 = vadd.f32 0.0, %v217
  %v219 = vpop.f32.mrf.mxu0
  %v220 = vadd.f32 0.0, %v219
  %221 = vmatprep.mubr.f32.mxu0 0.0
  %222 = vmatmul.mubr.f32.gmra.mxu0 %v76
  %v223 = vpop.f32.mrf.mxu0
  %v224 = vadd.f32 0.0, %v223
  %v225 = vpop.f32.mrf.mxu0
  %v226 = vadd.f32 0.0, %v225
  %227 = vmatprep.mubr.f32.mxu0 0.0
  %228 = vmatmul.mubr.f32.gmra.mxu0 %v79
  %v229 = vpop.f32.mrf.mxu0
  %v230 = vadd.f32 0.0, %v229
  %v231 = vpop.f32.mrf.mxu0
  %v232 = vadd.f32 0.0, %v231
  %233 = vmatprep.mubr.f32.mxu0 0.0
  %234 = vmatmul.mubr.f32.gmra.mxu0 %v82
  %v235 = vpop.f32.mrf.mxu0
  %v236 = vadd.f32 0.0, %v235
  %v237 = vpop.f32.mrf.mxu0
  %v238 = vadd.f32 0.0, %v237
  %239 = vmatprep.mubr.f32.mxu0 0.0
  %240 = vmatmul.mubr.f32.gmra.mxu0 %v85
  %v241 = vpop.f32.mrf.mxu0
  %v242 = vadd.f32 0.0, %v241
  %v243 = vpop.f32.mrf.mxu0
  %v244 = vadd.f32 0.0, %v243
  %245 = vmatprep.mubr.f32.mxu0 0.0
  %246 = vmatmul.mubr.f32.gmra.mxu0 %v88
  %v247 = vpop.f32.mrf.mxu0
  %v248 = vadd.f32 0.0, %v247
  %v249 = vpop.f32.mrf.mxu0
  %v250 = vadd.f32 0.0, %v249
  %251 = vmatprep.mubr.f32.mxu0 0.0
  %252 = vmatmul.mubr.f32.gmra.mxu0 %v91
  %v253 = vpop.f32.mrf.mxu0
  %v254 = vadd.f32 0.0, %v253
  %v255 = vpop.f32.mrf.mxu0
  %v256 = vadd.f32 0.0, %v255
  %257 = vmatprep.mubr.f32.mxu0 0.0
  %258 = vmatmul.mubr.f32.gmra.mxu0 %v94
  %v259 = vpop.f32.mrf.mxu0
  %v260 = vadd.f32 0.0, %v259
  %v261 = vpop.f32.mrf.mxu0
  %v262 = vadd.f32 0.0, %v261
  %263 = vmatprep.mubr.f32.mxu0 0.0
  %264 = vmatmul.mubr.f32.gmra.mxu0 %v97
  %v265 = vpop.f32.mrf.mxu0
  %v266 = vadd.f32 0.0, %v265
  %v267 = vpop.f32.mrf.mxu0
  %v268 = vadd.f32 0.0, %v267
  %269 = vmatprep.mubr.f32.mxu0 0.0
  %270 = vmatmul.mubr.f32.gmra.mxu0 %v100
  %v271 = vpop.f32.mrf.mxu0
  %v272 = vadd.f32 0.0, %v271
  %v273 = vpop.f32.mrf.mxu0
  %v274 = vadd.f32 0.0, %v273
  %275 = vmatprep.mubr.f32.mxu0 0.0
  %276 = vmatmul.mubr.f32.gmra.mxu0 %v103
  %v277 = vpop.f32.mrf.mxu0
  %v278 = vadd.f32 0.0, %v277
  %v279 = vpop.f32.mrf.mxu0
  %v280 = vadd.f32 0.0, %v279
  %281 = vmatprep.mubr.f32.mxu0 0.0
  %282 = vmatmul.mubr.f32.gmra.mxu0 %v106
  %v283 = vpop.f32.mrf.mxu0
  %v284 = vadd.f32 0.0, %v283
  %v285 = vpop.f32.mrf.mxu0
  %v286 = vadd.f32 0.0, %v285
  %287 = vmatprep.mubr.f32.mxu0 0.0
  %288 = vmatmul.mubr.f32.gmra.mxu0 %v109
  %v289 = vpop.f32.mrf.mxu0
  %v290 = vadd.f32 0.0, %v289
  %v291 = vpop.f32.mrf.mxu0
  %v292 = vadd.f32 0.0, %v291
  %293 = vmatprep.mubr.f32.mxu0 0.0
  %294 = vmatmul.mubr.f32.gmra.mxu0 %v112
  %v295 = vpop.f32.mrf.mxu0
  %v296 = vadd.f32 0.0, %v295
  %v297 = vpop.f32.mrf.mxu0
  %v298 = vadd.f32 0.0, %v297
  %299 = vmatprep.mubr.f32.mxu0 0.0
  %300 = vmatmul.mubr.f32.gmra.mxu0 %v115
  %v301 = vpop.f32.mrf.mxu0
  %v302 = vadd.f32 0.0, %v301
  %v303 = vpop.f32.mrf.mxu0
  %v304 = vadd.f32 0.0, %v303
  %305 = vmatprep.mubr.f32.mxu0 0.0
  %306 = vmatmul.mubr.f32.gmra.mxu0 %v118
  %v307 = vpop.f32.mrf.mxu0
  %v308 = vadd.f32 0.0, %v307
  %v309 = vpop.f32.mrf.mxu0
  %v310 = vadd.f32 0.0, %v309
  %311 = vmatprep.mubr.f32.mxu0 0.0
  %312 = vmatmul.mubr.f32.gmra.mxu0 %v121
  %v313 = vpop.f32.mrf.mxu0
  %v314 = vadd.f32 0.0, %v313
  %v315 = vpop.f32.mrf.mxu0
  %v316 = vadd.f32 0.0, %v315
  %317 = vmatprep.mubr.f32.mxu0 0.0
  %318 = vmatmul.mubr.f32.gmra.mxu0 %v124
  %v319 = vpop.f32.mrf.mxu0
  %v320 = vadd.f32 0.0, %v319
  %v321 = vpop.f32.mrf.mxu0
  %v322 = vadd.f32 0.0, %v321
  %323 = vmatprep.mubr.f32.mxu0 0.0
  %324 = vmatmul.mubr.f32.gmra.mxu0 %v127
  %v325 = vpop.f32.mrf.mxu0
  %v326 = vadd.f32 0.0, %v325
  %v327 = vpop.f32.mrf.mxu0
  %v328 = vadd.f32 0.0, %v327
  %329 = vmatprep.mubr.f32.mxu0 0.0
  %330 = vmatmul.mubr.f32.gmra.mxu0 %v130
  %v331 = vpop.f32.mrf.mxu0
  %v332 = vadd.f32 0.0, %v331
  %v333 = vpop.f32.mrf.mxu0
  %v334 = vadd.f32 0.0, %v333
  %335 = vmatprep.mubr.f32.mxu0 0.0
  %336 = vmatmul.mubr.f32.gmra.mxu0 %v133
  %v337 = vpop.f32.mrf.mxu0
  %v338 = vadd.f32 0.0, %v337
  %v339 = vpop.f32.mrf.mxu0
  %v340 = vadd.f32 0.0, %v339
  %341 = vmatprep.mubr.f32.mxu0 0.0
  %342 = vmatmul.mubr.f32.gmra.mxu0 %v136
  %v343 = vpop.f32.mrf.mxu0
  %v344 = vadd.f32 0.0, %v343
  %v345 = vpop.f32.mrf.mxu0
  %v346 = vadd.f32 0.0, %v345
  %347 = vmatprep.mubr.f32.mxu0 0.0
  %348 = vmatmul.mubr.f32.gmra.mxu0 %v139
  %v349 = vpop.f32.mrf.mxu0
  %v350 = vadd.f32 0.0, %v349
  %v351 = vpop.f32.mrf.mxu0
  %v352 = vadd.f32 0.0, %v351
  %353 = vmatprep.mubr.f32.mxu0 0.0
  %354 = vmatmul.mubr.f32.gmra.mxu0 %v142
  %v355 = vpop.f32.mrf.mxu0
  %v356 = vadd.f32 0.0, %v355
  %v357 = vpop.f32.mrf.mxu0
  %v358 = vadd.f32 0.0, %v357
  %359 = vdwg.mxu0
  %v361 = vsel %vm71, %v26, 0
  %v364 = vsel %vm144, %v60, 0
  %v367 = vsel %vm144, %v61, 0
  %369 = vmatprep.subr.mxu0 0.0
  %370 = vmatpush1.msra.mxu0 0.0
  %371 = vmatprep.subr.mxu0 0.0
  %372 = vmatpush1.msra.mxu0 0.0
  %373 = vmatprep.subr.mxu0 0.0
  %374 = vmatpush1.msra.mxu0 0.0
  %375 = vmatprep.subr.mxu0 0.0
  %376 = vmatpush1.msra.mxu0 0.0
  %377 = vmatprep.subr.mxu0 0.0
  %378 = vmatpush1.msra.mxu0 0.0
  %379 = vmatprep.subr.mxu0 0.0
  %380 = vmatpush1.msra.mxu0 0.0
  %381 = vmatprep.subr.mxu0 0.0
  %382 = vmatpush1.msra.mxu0 0.0
  %383 = vmatprep.subr.mxu0 0.0
  %384 = vmatpush1.msra.mxu0 0.0
  %385 = vmatprep.subr.mxu0 0.0
  %386 = vmatpush1.msra.mxu0 0.0
  %387 = vmatprep.subr.mxu0 0.0
  %388 = vmatpush1.msra.mxu0 0.0
  %389 = vmatprep.subr.mxu0 0.0
  %390 = vmatpush1.msra.mxu0 0.0
  %391 = vmatprep.subr.mxu0 0.0
  %392 = vmatpush1.msra.mxu0 0.0
  %393 = vmatprep.subr.mxu0 %v367
  %394 = vmatpush1.msra.mxu0 %v364
  %395 = vmatprep.subr.mxu0 %v59
  %396 = vmatpush1.msra.mxu0 %v58
  %397 = vmatprep.subr.mxu0 %v57
  %398 = vmatpush1.msra.mxu0 %v56
  %399 = vmatprep.subr.mxu0 %v55
  %400 = vmatpush1.msra.mxu0 %v54
  %401 = vmatprep.subr.mxu0 0.0
  %402 = vmatpush2.msra.mxu0 0.0
  %403 = vmatprep.subr.mxu0 0.0
  %404 = vmatpush2.msra.mxu0 0.0
  %405 = vmatprep.subr.mxu0 0.0
  %406 = vmatpush2.msra.mxu0 0.0
  %407 = vmatprep.subr.mxu0 0.0
  %408 = vmatpush2.msra.mxu0 0.0
  %409 = vmatprep.subr.mxu0 0.0
  %410 = vmatpush2.msra.mxu0 0.0
  %411 = vmatprep.subr.mxu0 0.0
  %412 = vmatpush2.msra.mxu0 0.0
  %413 = vmatprep.subr.mxu0 0.0
  %414 = vmatpush2.msra.mxu0 0.0
  %415 = vmatprep.subr.mxu0 0.0
  %416 = vmatpush2.msra.mxu0 0.0
  %417 = vmatprep.subr.mxu0 0.0
  %418 = vmatpush2.msra.mxu0 0.0
  %419 = vmatprep.subr.mxu0 0.0
  %420 = vmatpush2.msra.mxu0 0.0
  %421 = vmatprep.subr.mxu0 0.0
  %422 = vmatpush2.msra.mxu0 0.0
  %423 = vmatprep.subr.mxu0 0.0
  %424 = vmatpush2.msra.mxu0 0.0
  %425 = vmatprep.subr.mxu0 0.0
  %426 = vmatpush2.msra.mxu0 0.0
  %427 = vmatprep.subr.mxu0 0.0
  %428 = vmatpush2.msra.mxu0 0.0
  %429 = vmatprep.subr.mxu0 0.0
  %430 = vmatpush2.msra.mxu0 0.0
  %431 = vmatprep.subr.mxu0 0.0
  %432 = vmatpush2.msra.mxu0 0.0
  %433 = vmatprep.mubr.f32.mxu0 0.0
  %434 = vmatmul.mubr.f32.gmra.mxu0 %v361
  %v435 = vpop.f32.mrf.mxu0
  %v436 = vadd.f32 %v218, %v435
  %v437 = vpop.f32.mrf.mxu0
  %v438 = vadd.f32 %v220, %v437
  %439 = vmatprep.mubr.f32.mxu0 0.0
  %440 = vmatmul.mubr.f32.gmra.mxu0 %v73
  %v441 = vpop.f32.mrf.mxu0
  %v442 = vadd.f32 %v224, %v441
  %v443 = vpop.f32.mrf.mxu0
  %v444 = vadd.f32 %v226, %v443
  %445 = vmatprep.mubr.f32.mxu0 0.0
  %446 = vmatmul.mubr.f32.gmra.mxu0 %v76
  %v447 = vpop.f32.mrf.mxu0
  %v448 = vadd.f32 %v230, %v447
  %v449 = vpop.f32.mrf.mxu0
  %v450 = vadd.f32 %v232, %v449
  %451 = vmatprep.mubr.f32.mxu0 0.0
  %452 = vmatmul.mubr.f32.gmra.mxu0 %v79
  %v453 = vpop.f32.mrf.mxu0
  %v454 = vadd.f32 %v236, %v453
  %v455 = vpop.f32.mrf.mxu0
  %v456 = vadd.f32 %v238, %v455
  %457 = vmatprep.mubr.f32.mxu0 0.0
  %458 = vmatmul.mubr.f32.gmra.mxu0 %v82
  %v459 = vpop.f32.mrf.mxu0
  %v460 = vadd.f32 %v242, %v459
  %v461 = vpop.f32.mrf.mxu0
  %v462 = vadd.f32 %v244, %v461
  %463 = vmatprep.mubr.f32.mxu0 0.0
  %464 = vmatmul.mubr.f32.gmra.mxu0 %v85
  %v465 = vpop.f32.mrf.mxu0
  %v466 = vadd.f32 %v248, %v465
  %v467 = vpop.f32.mrf.mxu0
  %v468 = vadd.f32 %v250, %v467
  %469 = vmatprep.mubr.f32.mxu0 0.0
  %470 = vmatmul.mubr.f32.gmra.mxu0 %v88
  %v471 = vpop.f32.mrf.mxu0
  %v472 = vadd.f32 %v254, %v471
  %v473 = vpop.f32.mrf.mxu0
  %v474 = vadd.f32 %v256, %v473
  %475 = vmatprep.mubr.f32.mxu0 0.0
  %476 = vmatmul.mubr.f32.gmra.mxu0 %v91
  %v477 = vpop.f32.mrf.mxu0
  %v478 = vadd.f32 %v260, %v477
  %v479 = vpop.f32.mrf.mxu0
  %v480 = vadd.f32 %v262, %v479
  %481 = vmatprep.mubr.f32.mxu0 0.0
  %482 = vmatmul.mubr.f32.gmra.mxu0 %v94
  %v483 = vpop.f32.mrf.mxu0
  %v484 = vadd.f32 %v266, %v483
  %v485 = vpop.f32.mrf.mxu0
  %v486 = vadd.f32 %v268, %v485
  %487 = vmatprep.mubr.f32.mxu0 0.0
  %488 = vmatmul.mubr.f32.gmra.mxu0 %v97
  %v489 = vpop.f32.mrf.mxu0
  %v490 = vadd.f32 %v272, %v489
  %v491 = vpop.f32.mrf.mxu0
  %v492 = vadd.f32 %v274, %v491
  %493 = vmatprep.mubr.f32.mxu0 0.0
  %494 = vmatmul.mubr.f32.gmra.mxu0 %v100
  %v495 = vpop.f32.mrf.mxu0
  %v496 = vadd.f32 %v278, %v495
  %v497 = vpop.f32.mrf.mxu0
  %v498 = vadd.f32 %v280, %v497
  %499 = vmatprep.mubr.f32.mxu0 0.0
  %500 = vmatmul.mubr.f32.gmra.mxu0 %v103
  %v501 = vpop.f32.mrf.mxu0
  %v502 = vadd.f32 %v284, %v501
  %v503 = vpop.f32.mrf.mxu0
  %v504 = vadd.f32 %v286, %v503
  %505 = vmatprep.mubr.f32.mxu0 0.0
  %506 = vmatmul.mubr.f32.gmra.mxu0 %v106
  %v507 = vpop.f32.mrf.mxu0
  %v508 = vadd.f32 %v290, %v507
  %v509 = vpop.f32.mrf.mxu0
  %v510 = vadd.f32 %v292, %v509
  %511 = vmatprep.mubr.f32.mxu0 0.0
  %512 = vmatmul.mubr.f32.gmra.mxu0 %v109
  %v513 = vpop.f32.mrf.mxu0
  %v514 = vadd.f32 %v296, %v513
  %v515 = vpop.f32.mrf.mxu0
  %v516 = vadd.f32 %v298, %v515
  %517 = vmatprep.mubr.f32.mxu0 0.0
  %518 = vmatmul.mubr.f32.gmra.mxu0 %v112
  %v519 = vpop.f32.mrf.mxu0
  %v520 = vadd.f32 %v302, %v519
  %v521 = vpop.f32.mrf.mxu0
  %v522 = vadd.f32 %v304, %v521
  %523 = vmatprep.mubr.f32.mxu0 0.0
  %524 = vmatmul.mubr.f32.gmra.mxu0 %v115
  %v525 = vpop.f32.mrf.mxu0
  %v526 = vadd.f32 %v308, %v525
  %v527 = vpop.f32.mrf.mxu0
  %v528 = vadd.f32 %v310, %v527
  %529 = vmatprep.mubr.f32.mxu0 0.0
  %530 = vmatmul.mubr.f32.gmra.mxu0 %v118
  %v531 = vpop.f32.mrf.mxu0
  %v532 = vadd.f32 %v314, %v531
  %v533 = vpop.f32.mrf.mxu0
  %v534 = vadd.f32 %v316, %v533
  %535 = vmatprep.mubr.f32.mxu0 0.0
  %536 = vmatmul.mubr.f32.gmra.mxu0 %v121
  %v537 = vpop.f32.mrf.mxu0
  %v538 = vadd.f32 %v320, %v537
  %v539 = vpop.f32.mrf.mxu0
  %v540 = vadd.f32 %v322, %v539
  %541 = vmatprep.mubr.f32.mxu0 0.0
  %542 = vmatmul.mubr.f32.gmra.mxu0 %v124
  %v543 = vpop.f32.mrf.mxu0
  %v544 = vadd.f32 %v326, %v543
  %v545 = vpop.f32.mrf.mxu0
  %v546 = vadd.f32 %v328, %v545
  %547 = vmatprep.mubr.f32.mxu0 0.0
  %548 = vmatmul.mubr.f32.gmra.mxu0 %v127
  %v549 = vpop.f32.mrf.mxu0
  %v550 = vadd.f32 %v332, %v549
  %v551 = vpop.f32.mrf.mxu0
  %v552 = vadd.f32 %v334, %v551
  %553 = vmatprep.mubr.f32.mxu0 0.0
  %554 = vmatmul.mubr.f32.gmra.mxu0 %v130
  %v555 = vpop.f32.mrf.mxu0
  %v556 = vadd.f32 %v338, %v555
  %v557 = vpop.f32.mrf.mxu0
  %v558 = vadd.f32 %v340, %v557
  %559 = vmatprep.mubr.f32.mxu0 0.0
  %560 = vmatmul.mubr.f32.gmra.mxu0 %v133
  %v561 = vpop.f32.mrf.mxu0
  %v562 = vadd.f32 %v344, %v561
  %v563 = vpop.f32.mrf.mxu0
  %v564 = vadd.f32 %v346, %v563
  %565 = vmatprep.mubr.f32.mxu0 0.0
  %566 = vmatmul.mubr.f32.gmra.mxu0 %v136
  %v567 = vpop.f32.mrf.mxu0
  %v568 = vadd.f32 %v350, %v567
  %v569 = vpop.f32.mrf.mxu0
  %v570 = vadd.f32 %v352, %v569
  %571 = vmatprep.mubr.f32.mxu0 0.0
  %572 = vmatmul.mubr.f32.gmra.mxu0 %v139
  %v573 = vpop.f32.mrf.mxu0
  %v574 = vadd.f32 %v356, %v573
  %v575 = vpop.f32.mrf.mxu0
  %v576 = vadd.f32 %v358, %v575
  %577 = vdwg.mxu0
  %s578 = scalar_lea.vmem %s1, 128
  %v579 = vld [vmem:[%s578] sm:$0xff]
  %v580 = vld [vmem:[%s578 + $0x8] sm:$0xff]
  %v581 = vld [vmem:[%s578 + $0x10] sm:$0xff]
  %v582 = vld [vmem:[%s578 + $0x18] sm:$0xff]
  %v583 = vld [vmem:[%s578 + $0x20] sm:$0xff]
  %v584 = vld [vmem:[%s578 + $0x28] sm:$0xff]
  %v585 = vld [vmem:[%s578 + $0x30] sm:$0xf]
  %v586 = vld [vmem:[%s578 + $0x38] sm:$0xf]
  %v588 = vsel %vm71, %v51, 0
  %v591 = vsel %vm144, %v585, 0
  %v594 = vsel %vm144, %v586, 0
  %596 = vmatprep.subr.mxu0 0.0
  %597 = vmatpush1.msra.mxu0 0.0
  %598 = vmatprep.subr.mxu0 0.0
  %599 = vmatpush1.msra.mxu0 0.0
  %600 = vmatprep.subr.mxu0 0.0
  %601 = vmatpush1.msra.mxu0 0.0
  %602 = vmatprep.subr.mxu0 0.0
  %603 = vmatpush1.msra.mxu0 0.0
  %604 = vmatprep.subr.mxu0 0.0
  %605 = vmatpush1.msra.mxu0 0.0
  %606 = vmatprep.subr.mxu0 0.0
  %607 = vmatpush1.msra.mxu0 0.0
  %608 = vmatprep.subr.mxu0 0.0
  %609 = vmatpush1.msra.mxu0 0.0
  %610 = vmatprep.subr.mxu0 0.0
  %611 = vmatpush1.msra.mxu0 0.0
  %612 = vmatprep.subr.mxu0 0.0
  %613 = vmatpush1.msra.mxu0 0.0
  %614 = vmatprep.subr.mxu0 0.0
  %615 = vmatpush1.msra.mxu0 0.0
  %616 = vmatprep.subr.mxu0 0.0
  %617 = vmatpush1.msra.mxu0 0.0
  %618 = vmatprep.subr.mxu0 0.0
  %619 = vmatpush1.msra.mxu0 0.0
  %620 = vmatprep.subr.mxu0 %v594
  %621 = vmatpush1.msra.mxu0 %v591
  %622 = vmatprep.subr.mxu0 %v584
  %623 = vmatpush1.msra.mxu0 %v583
  %624 = vmatprep.subr.mxu0 %v582
  %625 = vmatpush1.msra.mxu0 %v581
  %626 = vmatprep.subr.mxu0 %v580
  %627 = vmatpush1.msra.mxu0 %v579
  %628 = vmatprep.subr.mxu0 0.0
  %629 = vmatpush2.msra.mxu0 0.0
  %630 = vmatprep.subr.mxu0 0.0
  %631 = vmatpush2.msra.mxu0 0.0
  %632 = vmatprep.subr.mxu0 0.0
  %633 = vmatpush2.msra.mxu0 0.0
  %634 = vmatprep.subr.mxu0 0.0
  %635 = vmatpush2.msra.mxu0 0.0
  %636 = vmatprep.subr.mxu0 0.0
  %637 = vmatpush2.msra.mxu0 0.0
  %638 = vmatprep.subr.mxu0 0.0
  %639 = vmatpush2.msra.mxu0 0.0
  %640 = vmatprep.subr.mxu0 0.0
  %641 = vmatpush2.msra.mxu0 0.0
  %642 = vmatprep.subr.mxu0 0.0
  %643 = vmatpush2.msra.mxu0 0.0
  %644 = vmatprep.subr.mxu0 0.0
  %645 = vmatpush2.msra.mxu0 0.0
  %646 = vmatprep.subr.mxu0 0.0
  %647 = vmatpush2.msra.mxu0 0.0
  %648 = vmatprep.subr.mxu0 0.0
  %649 = vmatpush2.msra.mxu0 0.0
  %650 = vmatprep.subr.mxu0 0.0
  %651 = vmatpush2.msra.mxu0 0.0
  %652 = vmatprep.subr.mxu0 0.0
  %653 = vmatpush2.msra.mxu0 0.0
  %654 = vmatprep.subr.mxu0 0.0
  %655 = vmatpush2.msra.mxu0 0.0
  %656 = vmatprep.subr.mxu0 0.0
  %657 = vmatpush2.msra.mxu0 0.0
  %658 = vmatprep.subr.mxu0 0.0
  %659 = vmatpush2.msra.mxu0 0.0
  %660 = vmatprep.mubr.f32.mxu0 0.0
  %661 = vmatmul.mubr.f32.gmra.mxu0 %v76
  %v662 = vpop.f32.mrf.mxu0
  %v663 = vadd.f32 0.0, %v662
  %v664 = vpop.f32.mrf.mxu0
  %v665 = vadd.f32 0.0, %v664
  %666 = vmatprep.mubr.f32.mxu0 0.0
  %667 = vmatmul.mubr.f32.gmra.mxu0 %v79
  %v668 = vpop.f32.mrf.mxu0
  %v669 = vadd.f32 0.0, %v668
  %v670 = vpop.f32.mrf.mxu0
  %v671 = vadd.f32 0.0, %v670
  %672 = vmatprep.mubr.f32.mxu0 0.0
  %673 = vmatmul.mubr.f32.gmra.mxu0 %v82
  %v674 = vpop.f32.mrf.mxu0
  %v675 = vadd.f32 0.0, %v674
  %v676 = vpop.f32.mrf.mxu0
  %v677 = vadd.f32 0.0, %v676
  %678 = vmatprep.mubr.f32.mxu0 0.0
  %679 = vmatmul.mubr.f32.gmra.mxu0 %v85
  %v680 = vpop.f32.mrf.mxu0
  %v681 = vadd.f32 0.0, %v680
  %v682 = vpop.f32.mrf.mxu0
  %v683 = vadd.f32 0.0, %v682
  %684 = vmatprep.mubr.f32.mxu0 0.0
  %685 = vmatmul.mubr.f32.gmra.mxu0 %v88
  %v686 = vpop.f32.mrf.mxu0
  %v687 = vadd.f32 0.0, %v686
  %v688 = vpop.f32.mrf.mxu0
  %v689 = vadd.f32 0.0, %v688
  %690 = vmatprep.mubr.f32.mxu0 0.0
  %691 = vmatmul.mubr.f32.gmra.mxu0 %v91
  %v692 = vpop.f32.mrf.mxu0
  %v693 = vadd.f32 0.0, %v692
  %v694 = vpop.f32.mrf.mxu0
  %v695 = vadd.f32 0.0, %v694
  %696 = vmatprep.mubr.f32.mxu0 0.0
  %697 = vmatmul.mubr.f32.gmra.mxu0 %v94
  %v698 = vpop.f32.mrf.mxu0
  %v699 = vadd.f32 0.0, %v698
  %v700 = vpop.f32.mrf.mxu0
  %v701 = vadd.f32 0.0, %v700
  %702 = vmatprep.mubr.f32.mxu0 0.0
  %703 = vmatmul.mubr.f32.gmra.mxu0 %v97
  %v704 = vpop.f32.mrf.mxu0
  %v705 = vadd.f32 0.0, %v704
  %v706 = vpop.f32.mrf.mxu0
  %v707 = vadd.f32 0.0, %v706
  %708 = vmatprep.mubr.f32.mxu0 0.0
  %709 = vmatmul.mubr.f32.gmra.mxu0 %v100
  %v710 = vpop.f32.mrf.mxu0
  %v711 = vadd.f32 0.0, %v710
  %v712 = vpop.f32.mrf.mxu0
  %v713 = vadd.f32 0.0, %v712
  %714 = vmatprep.mubr.f32.mxu0 0.0
  %715 = vmatmul.mubr.f32.gmra.mxu0 %v103
  %v716 = vpop.f32.mrf.mxu0
  %v717 = vadd.f32 0.0, %v716
  %v718 = vpop.f32.mrf.mxu0
  %v719 = vadd.f32 0.0, %v718
  %720 = vmatprep.mubr.f32.mxu0 0.0
  %721 = vmatmul.mubr.f32.gmra.mxu0 %v106
  %v722 = vpop.f32.mrf.mxu0
  %v723 = vadd.f32 0.0, %v722
  %v724 = vpop.f32.mrf.mxu0
  %v725 = vadd.f32 0.0, %v724
  %726 = vmatprep.mubr.f32.mxu0 0.0
  %727 = vmatmul.mubr.f32.gmra.mxu0 %v109
  %v728 = vpop.f32.mrf.mxu0
  %v729 = vadd.f32 0.0, %v728
  %v730 = vpop.f32.mrf.mxu0
  %v731 = vadd.f32 0.0, %v730
  %732 = vmatprep.mubr.f32.mxu0 0.0
  %733 = vmatmul.mubr.f32.gmra.mxu0 %v112
  %v734 = vpop.f32.mrf.mxu0
  %v735 = vadd.f32 0.0, %v734
  %v736 = vpop.f32.mrf.mxu0
  %v737 = vadd.f32 0.0, %v736
  %738 = vmatprep.mubr.f32.mxu0 0.0
  %739 = vmatmul.mubr.f32.gmra.mxu0 %v115
  %v740 = vpop.f32.mrf.mxu0
  %v741 = vadd.f32 0.0, %v740
  %v742 = vpop.f32.mrf.mxu0
  %v743 = vadd.f32 0.0, %v742
  %744 = vmatprep.mubr.f32.mxu0 0.0
  %745 = vmatmul.mubr.f32.gmra.mxu0 %v118
  %v746 = vpop.f32.mrf.mxu0
  %v747 = vadd.f32 0.0, %v746
  %v748 = vpop.f32.mrf.mxu0
  %v749 = vadd.f32 0.0, %v748
  %750 = vmatprep.mubr.f32.mxu0 0.0
  %751 = vmatmul.mubr.f32.gmra.mxu0 %v121
  %v752 = vpop.f32.mrf.mxu0
  %v753 = vadd.f32 0.0, %v752
  %v754 = vpop.f32.mrf.mxu0
  %v755 = vadd.f32 0.0, %v754
  %756 = vmatprep.mubr.f32.mxu0 0.0
  %757 = vmatmul.mubr.f32.gmra.mxu0 %v124
  %v758 = vpop.f32.mrf.mxu0
  %v759 = vadd.f32 0.0, %v758
  %v760 = vpop.f32.mrf.mxu0
  %v761 = vadd.f32 0.0, %v760
  %762 = vmatprep.mubr.f32.mxu0 0.0
  %763 = vmatmul.mubr.f32.gmra.mxu0 %v127
  %v764 = vpop.f32.mrf.mxu0
  %v765 = vadd.f32 0.0, %v764
  %v766 = vpop.f32.mrf.mxu0
  %v767 = vadd.f32 0.0, %v766
  %768 = vmatprep.mubr.f32.mxu0 0.0
  %769 = vmatmul.mubr.f32.gmra.mxu0 %v130
  %v770 = vpop.f32.mrf.mxu0
  %v771 = vadd.f32 0.0, %v770
  %v772 = vpop.f32.mrf.mxu0
  %v773 = vadd.f32 0.0, %v772
  %774 = vmatprep.mubr.f32.mxu0 0.0
  %775 = vmatmul.mubr.f32.gmra.mxu0 %v133
  %v776 = vpop.f32.mrf.mxu0
  %v777 = vadd.f32 0.0, %v776
  %v778 = vpop.f32.mrf.mxu0
  %v779 = vadd.f32 0.0, %v778
  %780 = vmatprep.mubr.f32.mxu0 0.0
  %781 = vmatmul.mubr.f32.gmra.mxu0 %v136
  %v782 = vpop.f32.mrf.mxu0
  %v783 = vadd.f32 0.0, %v782
  %v784 = vpop.f32.mrf.mxu0
  %v785 = vadd.f32 0.0, %v784
  %786 = vmatprep.mubr.f32.mxu0 0.0
  %787 = vmatmul.mubr.f32.gmra.mxu0 %v139
  %v788 = vpop.f32.mrf.mxu0
  %v789 = vadd.f32 0.0, %v788
  %v790 = vpop.f32.mrf.mxu0
  %v791 = vadd.f32 0.0, %v790
  %792 = vmatprep.mubr.f32.mxu0 0.0
  %793 = vmatmul.mubr.f32.gmra.mxu0 %v142
  %v794 = vpop.f32.mrf.mxu0
  %v795 = vadd.f32 0.0, %v794
  %v796 = vpop.f32.mrf.mxu0
  %v797 = vadd.f32 0.0, %v796
  %798 = vmatprep.mubr.f32.mxu0 0.0
  %799 = vmatmul.mubr.f32.gmra.mxu0 %v588
  %v800 = vpop.f32.mrf.mxu0
  %v801 = vadd.f32 0.0, %v800
  %v802 = vpop.f32.mrf.mxu0
  %v803 = vadd.f32 0.0, %v802
  %804 = vdwg.mxu0
  %v805 = vadd.f32 %v436, %v663
  %v806 = vadd.f32 %v438, %v665
  %v807 = vadd.f32 %v442, %v669
  %v808 = vadd.f32 %v444, %v671
  %v809 = vadd.f32 %v448, %v675
  %v810 = vadd.f32 %v450, %v677
  %v811 = vadd.f32 %v454, %v681
  %v812 = vadd.f32 %v456, %v683
  %v813 = vadd.f32 %v460, %v687
  %v814 = vadd.f32 %v462, %v689
  %v815 = vadd.f32 %v466, %v693
  %v816 = vadd.f32 %v468, %v695
  %v817 = vadd.f32 %v472, %v699
  %v818 = vadd.f32 %v474, %v701
  %v819 = vadd.f32 %v478, %v705
  %v820 = vadd.f32 %v480, %v707
  %v821 = vadd.f32 %v484, %v711
  %v822 = vadd.f32 %v486, %v713
  %v823 = vadd.f32 %v490, %v717
  %v824 = vadd.f32 %v492, %v719
  %v825 = vadd.f32 %v496, %v723
  %v826 = vadd.f32 %v498, %v725
  %v827 = vadd.f32 %v502, %v729
  %v828 = vadd.f32 %v504, %v731
  %v829 = vadd.f32 %v508, %v735
  %v830 = vadd.f32 %v510, %v737
  %v831 = vadd.f32 %v514, %v741
  %v832 = vadd.f32 %v516, %v743
  %v833 = vadd.f32 %v520, %v747
  %v834 = vadd.f32 %v522, %v749
  %v835 = vadd.f32 %v526, %v753
  %v836 = vadd.f32 %v528, %v755
  %v837 = vadd.f32 %v532, %v759
  %v838 = vadd.f32 %v534, %v761
  %v839 = vadd.f32 %v538, %v765
  %v840 = vadd.f32 %v540, %v767
  %v841 = vadd.f32 %v544, %v771
  %v842 = vadd.f32 %v546, %v773
  %v843 = vadd.f32 %v550, %v777
  %v844 = vadd.f32 %v552, %v779
  %v845 = vadd.f32 %v556, %v783
  %v846 = vadd.f32 %v558, %v785
  %v847 = vadd.f32 %v562, %v789
  %v848 = vadd.f32 %v564, %v791
  %v849 = vadd.f32 %v568, %v795
  %v850 = vadd.f32 %v570, %v797
  %v851 = vadd.f32 %v574, %v801
  %v852 = vadd.f32 %v576, %v803
  %s853 = scalar_lea.vmem %s1, 192
  %v854 = vld [vmem:[%s853] sm:$0xff]
  %v855 = vld [vmem:[%s853 + $0x8] sm:$0xff]
  %v856 = vld [vmem:[%s853 + $0x10] sm:$0xff]
  %v857 = vld [vmem:[%s853 + $0x18] sm:$0xff]
  %v858 = vld [vmem:[%s853 + $0x20] sm:$0xff]
  %v859 = vld [vmem:[%s853 + $0x28] sm:$0xff]
  %v860 = vld [vmem:[%s853 + $0x30] sm:$0xf]
  %v861 = vld [vmem:[%s853 + $0x38] sm:$0xf]
  %v863 = vsel %vm71, %v52, 0
  %v866 = vsel %vm144, %v860, 0
  %v869 = vsel %vm144, %v861, 0
  %871 = vmatprep.subr.mxu0 0.0
  %872 = vmatpush1.msra.mxu0 0.0
  %873 = vmatprep.subr.mxu0 0.0
  %874 = vmatpush1.msra.mxu0 0.0
  %875 = vmatprep.subr.mxu0 0.0
  %876 = vmatpush1.msra.mxu0 0.0
  %877 = vmatprep.subr.mxu0 0.0
  %878 = vmatpush1.msra.mxu0 0.0
  %879 = vmatprep.subr.mxu0 0.0
  %880 = vmatpush1.msra.mxu0 0.0
  %881 = vmatprep.subr.mxu0 0.0
  %882 = vmatpush1.msra.mxu0 0.0
  %883 = vmatprep.subr.mxu0 0.0
  %884 = vmatpush1.msra.mxu0 0.0
  %885 = vmatprep.subr.mxu0 0.0
  %886 = vmatpush1.msra.mxu0 0.0
  %887 = vmatprep.subr.mxu0 0.0
  %888 = vmatpush1.msra.mxu0 0.0
  %889 = vmatprep.subr.mxu0 0.0
  %890 = vmatpush1.msra.mxu0 0.0
  %891 = vmatprep.subr.mxu0 0.0
  %892 = vmatpush1.msra.mxu0 0.0
  %893 = vmatprep.subr.mxu0 0.0
  %894 = vmatpush1.msra.mxu0 0.0
  %895 = vmatprep.subr.mxu0 %v869
  %896 = vmatpush1.msra.mxu0 %v866
  %897 = vmatprep.subr.mxu0 %v859
  %898 = vmatpush1.msra.mxu0 %v858
  %899 = vmatprep.subr.mxu0 %v857
  %900 = vmatpush1.msra.mxu0 %v856
  %901 = vmatprep.subr.mxu0 %v855
  %902 = vmatpush1.msra.mxu0 %v854
  %903 = vmatprep.subr.mxu0 0.0
  %904 = vmatpush2.msra.mxu0 0.0
  %905 = vmatprep.subr.mxu0 0.0
  %906 = vmatpush2.msra.mxu0 0.0
  %907 = vmatprep.subr.mxu0 0.0
  %908 = vmatpush2.msra.mxu0 0.0
  %909 = vmatprep.subr.mxu0 0.0
  %910 = vmatpush2.msra.mxu0 0.0
  %911 = vmatprep.subr.mxu0 0.0
  %912 = vmatpush2.msra.mxu0 0.0
  %913 = vmatprep.subr.mxu0 0.0
  %914 = vmatpush2.msra.mxu0 0.0
  %915 = vmatprep.subr.mxu0 0.0
  %916 = vmatpush2.msra.mxu0 0.0
  %917 = vmatprep.subr.mxu0 0.0
  %918 = vmatpush2.msra.mxu0 0.0
  %919 = vmatprep.subr.mxu0 0.0
  %920 = vmatpush2.msra.mxu0 0.0
  %921 = vmatprep.subr.mxu0 0.0
  %922 = vmatpush2.msra.mxu0 0.0
  %923 = vmatprep.subr.mxu0 0.0
  %924 = vmatpush2.msra.mxu0 0.0
  %925 = vmatprep.subr.mxu0 0.0
  %926 = vmatpush2.msra.mxu0 0.0
  %927 = vmatprep.subr.mxu0 0.0
  %928 = vmatpush2.msra.mxu0 0.0
  %929 = vmatprep.subr.mxu0 0.0
  %930 = vmatpush2.msra.mxu0 0.0
  %931 = vmatprep.subr.mxu0 0.0
  %932 = vmatpush2.msra.mxu0 0.0
  %933 = vmatprep.subr.mxu0 0.0
  %934 = vmatpush2.msra.mxu0 0.0
  %935 = vmatprep.mubr.f32.mxu0 0.0
  %936 = vmatmul.mubr.f32.gmra.mxu0 %v79
  %v937 = vpop.f32.mrf.mxu0
  %v938 = vadd.f32 0.0, %v937
  %v939 = vpop.f32.mrf.mxu0
  %v940 = vadd.f32 0.0, %v939
  %941 = vmatprep.mubr.f32.mxu0 0.0
  %942 = vmatmul.mubr.f32.gmra.mxu0 %v82
  %v943 = vpop.f32.mrf.mxu0
  %v944 = vadd.f32 0.0, %v943
  %v945 = vpop.f32.mrf.mxu0
  %v946 = vadd.f32 0.0, %v945
  %947 = vmatprep.mubr.f32.mxu0 0.0
  %948 = vmatmul.mubr.f32.gmra.mxu0 %v85
  %v949 = vpop.f32.mrf.mxu0
  %v950 = vadd.f32 0.0, %v949
  %v951 = vpop.f32.mrf.mxu0
  %v952 = vadd.f32 0.0, %v951
  %953 = vmatprep.mubr.f32.mxu0 0.0
  %954 = vmatmul.mubr.f32.gmra.mxu0 %v88
  %v955 = vpop.f32.mrf.mxu0
  %v956 = vadd.f32 0.0, %v955
  %v957 = vpop.f32.mrf.mxu0
  %v958 = vadd.f32 0.0, %v957
  %959 = vmatprep.mubr.f32.mxu0 0.0
  %960 = vmatmul.mubr.f32.gmra.mxu0 %v91
  %v961 = vpop.f32.mrf.mxu0
  %v962 = vadd.f32 0.0, %v961
  %v963 = vpop.f32.mrf.mxu0
  %v964 = vadd.f32 0.0, %v963
  %965 = vmatprep.mubr.f32.mxu0 0.0
  %966 = vmatmul.mubr.f32.gmra.mxu0 %v94
  %v967 = vpop.f32.mrf.mxu0
  %v968 = vadd.f32 0.0, %v967
  %v969 = vpop.f32.mrf.mxu0
  %v970 = vadd.f32 0.0, %v969
  %971 = vmatprep.mubr.f32.mxu0 0.0
  %972 = vmatmul.mubr.f32.gmra.mxu0 %v97
  %v973 = vpop.f32.mrf.mxu0
  %v974 = vadd.f32 0.0, %v973
  %v975 = vpop.f32.mrf.mxu0
  %v976 = vadd.f32 0.0, %v975
  %977 = vmatprep.mubr.f32.mxu0 0.0
  %978 = vmatmul.mubr.f32.gmra.mxu0 %v100
  %v979 = vpop.f32.mrf.mxu0
  %v980 = vadd.f32 0.0, %v979
  %v981 = vpop.f32.mrf.mxu0
  %v982 = vadd.f32 0.0, %v981
  %983 = vmatprep.mubr.f32.mxu0 0.0
  %984 = vmatmul.mubr.f32.gmra.mxu0 %v103
  %v985 = vpop.f32.mrf.mxu0
  %v986 = vadd.f32 0.0, %v985
  %v987 = vpop.f32.mrf.mxu0
  %v988 = vadd.f32 0.0, %v987
  %989 = vmatprep.mubr.f32.mxu0 0.0
  %990 = vmatmul.mubr.f32.gmra.mxu0 %v106
  %v991 = vpop.f32.mrf.mxu0
  %v992 = vadd.f32 0.0, %v991
  %v993 = vpop.f32.mrf.mxu0
  %v994 = vadd.f32 0.0, %v993
  %995 = vmatprep.mubr.f32.mxu0 0.0
  %996 = vmatmul.mubr.f32.gmra.mxu0 %v109
  %v997 = vpop.f32.mrf.mxu0
  %v998 = vadd.f32 0.0, %v997
  %v999 = vpop.f32.mrf.mxu0
  %v1000 = vadd.f32 0.0, %v999
  %1001 = vmatprep.mubr.f32.mxu0 0.0
  %1002 = vmatmul.mubr.f32.gmra.mxu0 %v112
  %v1003 = vpop.f32.mrf.mxu0
  %v1004 = vadd.f32 0.0, %v1003
  %v1005 = vpop.f32.mrf.mxu0
  %v1006 = vadd.f32 0.0, %v1005
  %1007 = vmatprep.mubr.f32.mxu0 0.0
  %1008 = vmatmul.mubr.f32.gmra.mxu0 %v115
  %v1009 = vpop.f32.mrf.mxu0
  %v1010 = vadd.f32 0.0, %v1009
  %v1011 = vpop.f32.mrf.mxu0
  %v1012 = vadd.f32 0.0, %v1011
  %1013 = vmatprep.mubr.f32.mxu0 0.0
  %1014 = vmatmul.mubr.f32.gmra.mxu0 %v118
  %v1015 = vpop.f32.mrf.mxu0
  %v1016 = vadd.f32 0.0, %v1015
  %v1017 = vpop.f32.mrf.mxu0
  %v1018 = vadd.f32 0.0, %v1017
  %1019 = vmatprep.mubr.f32.mxu0 0.0
  %1020 = vmatmul.mubr.f32.gmra.mxu0 %v121
  %v1021 = vpop.f32.mrf.mxu0
  %v1022 = vadd.f32 0.0, %v1021
  %v1023 = vpop.f32.mrf.mxu0
  %v1024 = vadd.f32 0.0, %v1023
  %1025 = vmatprep.mubr.f32.mxu0 0.0
  %1026 = vmatmul.mubr.f32.gmra.mxu0 %v124
  %v1027 = vpop.f32.mrf.mxu0
  %v1028 = vadd.f32 0.0, %v1027
  %v1029 = vpop.f32.mrf.mxu0
  %v1030 = vadd.f32 0.0, %v1029
  %1031 = vmatprep.mubr.f32.mxu0 0.0
  %1032 = vmatmul.mubr.f32.gmra.mxu0 %v127
  %v1033 = vpop.f32.mrf.mxu0
  %v1034 = vadd.f32 0.0, %v1033
  %v1035 = vpop.f32.mrf.mxu0
  %v1036 = vadd.f32 0.0, %v1035
  %1037 = vmatprep.mubr.f32.mxu0 0.0
  %1038 = vmatmul.mubr.f32.gmra.mxu0 %v130
  %v1039 = vpop.f32.mrf.mxu0
  %v1040 = vadd.f32 0.0, %v1039
  %v1041 = vpop.f32.mrf.mxu0
  %v1042 = vadd.f32 0.0, %v1041
  %1043 = vmatprep.mubr.f32.mxu0 0.0
  %1044 = vmatmul.mubr.f32.gmra.mxu0 %v133
  %v1045 = vpop.f32.mrf.mxu0
  %v1046 = vadd.f32 0.0, %v1045
  %v1047 = vpop.f32.mrf.mxu0
  %v1048 = vadd.f32 0.0, %v1047
  %1049 = vmatprep.mubr.f32.mxu0 0.0
  %1050 = vmatmul.mubr.f32.gmra.mxu0 %v136
  %v1051 = vpop.f32.mrf.mxu0
  %v1052 = vadd.f32 0.0, %v1051
  %v1053 = vpop.f32.mrf.mxu0
  %v1054 = vadd.f32 0.0, %v1053
  %1055 = vmatprep.mubr.f32.mxu0 0.0
  %1056 = vmatmul.mubr.f32.gmra.mxu0 %v139
  %v1057 = vpop.f32.mrf.mxu0
  %v1058 = vadd.f32 0.0, %v1057
  %v1059 = vpop.f32.mrf.mxu0
  %v1060 = vadd.f32 0.0, %v1059
  %1061 = vmatprep.mubr.f32.mxu0 0.0
  %1062 = vmatmul.mubr.f32.gmra.mxu0 %v142
  %v1063 = vpop.f32.mrf.mxu0
  %v1064 = vadd.f32 0.0, %v1063
  %v1065 = vpop.f32.mrf.mxu0
  %v1066 = vadd.f32 0.0, %v1065
  %1067 = vmatprep.mubr.f32.mxu0 0.0
  %1068 = vmatmul.mubr.f32.gmra.mxu0 %v588
  %v1069 = vpop.f32.mrf.mxu0
  %v1070 = vadd.f32 0.0, %v1069
  %v1071 = vpop.f32.mrf.mxu0
  %v1072 = vadd.f32 0.0, %v1071
  %1073 = vmatprep.mubr.f32.mxu0 0.0
  %1074 = vmatmul.mubr.f32.gmra.mxu0 %v863
  %v1075 = vpop.f32.mrf.mxu0
  %v1076 = vadd.f32 0.0, %v1075
  %v1077 = vpop.f32.mrf.mxu0
  %v1078 = vadd.f32 0.0, %v1077
  %1079 = vdwg.mxu0
  %v1080 = vadd.f32 %v805, %v938
  %v1081 = vadd.f32 %v806, %v940
  %v1082 = vadd.f32 %v807, %v944
  %v1083 = vadd.f32 %v808, %v946
  %v1084 = vadd.f32 %v809, %v950
  %v1085 = vadd.f32 %v810, %v952
  %v1086 = vadd.f32 %v811, %v956
  %v1087 = vadd.f32 %v812, %v958
  %v1088 = vadd.f32 %v813, %v962
  %v1089 = vadd.f32 %v814, %v964
  %v1090 = vadd.f32 %v815, %v968
  %v1091 = vadd.f32 %v816, %v970
  %v1092 = vadd.f32 %v817, %v974
  %v1093 = vadd.f32 %v818, %v976
  %v1094 = vadd.f32 %v819, %v980
  %v1095 = vadd.f32 %v820, %v982
  %v1096 = vadd.f32 %v821, %v986
  %v1097 = vadd.f32 %v822, %v988
  %v1098 = vadd.f32 %v823, %v992
  %v1099 = vadd.f32 %v824, %v994
  %v1100 = vadd.f32 %v825, %v998
  %v1101 = vadd.f32 %v826, %v1000
  %v1102 = vadd.f32 %v827, %v1004
  %v1103 = vadd.f32 %v828, %v1006
  %v1104 = vadd.f32 %v829, %v1010
  %v1105 = vadd.f32 %v830, %v1012
  %v1106 = vadd.f32 %v831, %v1016
  %v1107 = vadd.f32 %v832, %v1018
  %v1108 = vadd.f32 %v833, %v1022
  %v1109 = vadd.f32 %v834, %v1024
  %v1110 = vadd.f32 %v835, %v1028
  %v1111 = vadd.f32 %v836, %v1030
  %v1112 = vadd.f32 %v837, %v1034
  %v1113 = vadd.f32 %v838, %v1036
  %v1114 = vadd.f32 %v839, %v1040
  %v1115 = vadd.f32 %v840, %v1042
  %v1116 = vadd.f32 %v841, %v1046
  %v1117 = vadd.f32 %v842, %v1048
  %v1118 = vadd.f32 %v843, %v1052
  %v1119 = vadd.f32 %v844, %v1054
  %v1120 = vadd.f32 %v845, %v1058
  %v1121 = vadd.f32 %v846, %v1060
  %v1122 = vadd.f32 %v847, %v1064
  %v1123 = vadd.f32 %v848, %v1066
  %v1124 = vadd.f32 %v849, %v1070
  %v1125 = vadd.f32 %v850, %v1072
  %v1126 = vadd.f32 %v851, %v1076
  %v1127 = vadd.f32 %v852, %v1078
  %s1128 = scalar_lea.vmem %s1, 256
  %v1129 = vld [vmem:[%s1128] sm:$0xff]
  %v1130 = vld [vmem:[%s1128 + $0x8] sm:$0xff]
  %v1131 = vld [vmem:[%s1128 + $0x10] sm:$0xff]
  %v1132 = vld [vmem:[%s1128 + $0x18] sm:$0xff]
  %v1133 = vld [vmem:[%s1128 + $0x20] sm:$0xff]
  %v1134 = vld [vmem:[%s1128 + $0x28] sm:$0xff]
  %v1135 = vld [vmem:[%s1128 + $0x30] sm:$0xf]
  %v1136 = vld [vmem:[%s1128 + $0x38] sm:$0xf]
  %v1138 = vsel %vm71, %v53, 0
  %v1141 = vsel %vm144, %v1135, 0
  %v1144 = vsel %vm144, %v1136, 0
  %1146 = vmatprep.subr.mxu0 0.0
  %1147 = vmatpush1.msra.mxu0 0.0
  %1148 = vmatprep.subr.mxu0 0.0
  %1149 = vmatpush1.msra.mxu0 0.0
  %1150 = vmatprep.subr.mxu0 0.0
  %1151 = vmatpush1.msra.mxu0 0.0
  %1152 = vmatprep.subr.mxu0 0.0
  %1153 = vmatpush1.msra.mxu0 0.0
  %1154 = vmatprep.subr.mxu0 0.0
  %1155 = vmatpush1.msra.mxu0 0.0
  %1156 = vmatprep.subr.mxu0 0.0
  %1157 = vmatpush1.msra.mxu0 0.0
  %1158 = vmatprep.subr.mxu0 0.0
  %1159 = vmatpush1.msra.mxu0 0.0
  %1160 = vmatprep.subr.mxu0 0.0
  %1161 = vmatpush1.msra.mxu0 0.0
  %1162 = vmatprep.subr.mxu0 0.0
  %1163 = vmatpush1.msra.mxu0 0.0
  %1164 = vmatprep.subr.mxu0 0.0
  %1165 = vmatpush1.msra.mxu0 0.0
  %1166 = vmatprep.subr.mxu0 0.0
  %1167 = vmatpush1.msra.mxu0 0.0
  %1168 = vmatprep.subr.mxu0 0.0
  %1169 = vmatpush1.msra.mxu0 0.0
  %1170 = vmatprep.subr.mxu0 %v1144
  %1171 = vmatpush1.msra.mxu0 %v1141
  %1172 = vmatprep.subr.mxu0 %v1134
  %1173 = vmatpush1.msra.mxu0 %v1133
  %1174 = vmatprep.subr.mxu0 %v1132
  %1175 = vmatpush1.msra.mxu0 %v1131
  %1176 = vmatprep.subr.mxu0 %v1130
  %1177 = vmatpush1.msra.mxu0 %v1129
  %1178 = vmatprep.subr.mxu0 0.0
  %1179 = vmatpush2.msra.mxu0 0.0
  %1180 = vmatprep.subr.mxu0 0.0
  %1181 = vmatpush2.msra.mxu0 0.0
  %1182 = vmatprep.subr.mxu0 0.0
  %1183 = vmatpush2.msra.mxu0 0.0
  %1184 = vmatprep.subr.mxu0 0.0
  %1185 = vmatpush2.msra.mxu0 0.0
  %1186 = vmatprep.subr.mxu0 0.0
  %1187 = vmatpush2.msra.mxu0 0.0
  %1188 = vmatprep.subr.mxu0 0.0
  %1189 = vmatpush2.msra.mxu0 0.0
  %1190 = vmatprep.subr.mxu0 0.0
  %1191 = vmatpush2.msra.mxu0 0.0
  %1192 = vmatprep.subr.mxu0 0.0
  %1193 = vmatpush2.msra.mxu0 0.0
  %1194 = vmatprep.subr.mxu0 0.0
  %1195 = vmatpush2.msra.mxu0 0.0
  %1196 = vmatprep.subr.mxu0 0.0
  %1197 = vmatpush2.msra.mxu0 0.0
  %1198 = vmatprep.subr.mxu0 0.0
  %1199 = vmatpush2.msra.mxu0 0.0
  %1200 = vmatprep.subr.mxu0 0.0
  %1201 = vmatpush2.msra.mxu0 0.0
  %1202 = vmatprep.subr.mxu0 0.0
  %1203 = vmatpush2.msra.mxu0 0.0
  %1204 = vmatprep.subr.mxu0 0.0
  %1205 = vmatpush2.msra.mxu0 0.0
  %1206 = vmatprep.subr.mxu0 0.0
  %1207 = vmatpush2.msra.mxu0 0.0
  %1208 = vmatprep.subr.mxu0 0.0
  %1209 = vmatpush2.msra.mxu0 0.0
  %1210 = vmatprep.mubr.f32.mxu0 0.0
  %1211 = vmatmul.mubr.f32.gmra.mxu0 %v82
  %v1212 = vpop.f32.mrf.mxu0
  %v1213 = vadd.f32 0.0, %v1212
  %v1214 = vpop.f32.mrf.mxu0
  %v1215 = vadd.f32 0.0, %v1214
  %1216 = vmatprep.mubr.f32.mxu0 0.0
  %1217 = vmatmul.mubr.f32.gmra.mxu0 %v85
  %v1218 = vpop.f32.mrf.mxu0
  %v1219 = vadd.f32 0.0, %v1218
  %v1220 = vpop.f32.mrf.mxu0
  %v1221 = vadd.f32 0.0, %v1220
  %1222 = vmatprep.mubr.f32.mxu0 0.0
  %1223 = vmatmul.mubr.f32.gmra.mxu0 %v88
  %v1224 = vpop.f32.mrf.mxu0
  %v1225 = vadd.f32 0.0, %v1224
  %v1226 = vpop.f32.mrf.mxu0
  %v1227 = vadd.f32 0.0, %v1226
  %1228 = vmatprep.mubr.f32.mxu0 0.0
  %1229 = vmatmul.mubr.f32.gmra.mxu0 %v91
  %v1230 = vpop.f32.mrf.mxu0
  %v1231 = vadd.f32 0.0, %v1230
  %v1232 = vpop.f32.mrf.mxu0
  %v1233 = vadd.f32 0.0, %v1232
  %1234 = vmatprep.mubr.f32.mxu0 0.0
  %1235 = vmatmul.mubr.f32.gmra.mxu0 %v94
  %v1236 = vpop.f32.mrf.mxu0
  %v1237 = vadd.f32 0.0, %v1236
  %v1238 = vpop.f32.mrf.mxu0
  %v1239 = vadd.f32 0.0, %v1238
  %1240 = vmatprep.mubr.f32.mxu0 0.0
  %1241 = vmatmul.mubr.f32.gmra.mxu0 %v97
  %v1242 = vpop.f32.mrf.mxu0
  %v1243 = vadd.f32 0.0, %v1242
  %v1244 = vpop.f32.mrf.mxu0
  %v1245 = vadd.f32 0.0, %v1244
  %1246 = vmatprep.mubr.f32.mxu0 0.0
  %1247 = vmatmul.mubr.f32.gmra.mxu0 %v100
  %v1248 = vpop.f32.mrf.mxu0
  %v1249 = vadd.f32 0.0, %v1248
  %v1250 = vpop.f32.mrf.mxu0
  %v1251 = vadd.f32 0.0, %v1250
  %1252 = vmatprep.mubr.f32.mxu0 0.0
  %1253 = vmatmul.mubr.f32.gmra.mxu0 %v103
  %v1254 = vpop.f32.mrf.mxu0
  %v1255 = vadd.f32 0.0, %v1254
  %v1256 = vpop.f32.mrf.mxu0
  %v1257 = vadd.f32 0.0, %v1256
  %1258 = vmatprep.mubr.f32.mxu0 0.0
  %1259 = vmatmul.mubr.f32.gmra.mxu0 %v106
  %v1260 = vpop.f32.mrf.mxu0
  %v1261 = vadd.f32 0.0, %v1260
  %v1262 = vpop.f32.mrf.mxu0
  %v1263 = vadd.f32 0.0, %v1262
  %1264 = vmatprep.mubr.f32.mxu0 0.0
  %1265 = vmatmul.mubr.f32.gmra.mxu0 %v109
  %v1266 = vpop.f32.mrf.mxu0
  %v1267 = vadd.f32 0.0, %v1266
  %v1268 = vpop.f32.mrf.mxu0
  %v1269 = vadd.f32 0.0, %v1268
  %1270 = vmatprep.mubr.f32.mxu0 0.0
  %1271 = vmatmul.mubr.f32.gmra.mxu0 %v112
  %v1272 = vpop.f32.mrf.mxu0
  %v1273 = vadd.f32 0.0, %v1272
  %v1274 = vpop.f32.mrf.mxu0
  %v1275 = vadd.f32 0.0, %v1274
  %1276 = vmatprep.mubr.f32.mxu0 0.0
  %1277 = vmatmul.mubr.f32.gmra.mxu0 %v115
  %v1278 = vpop.f32.mrf.mxu0
  %v1279 = vadd.f32 0.0, %v1278
  %v1280 = vpop.f32.mrf.mxu0
  %v1281 = vadd.f32 0.0, %v1280
  %1282 = vmatprep.mubr.f32.mxu0 0.0
  %1283 = vmatmul.mubr.f32.gmra.mxu0 %v118
  %v1284 = vpop.f32.mrf.mxu0
  %v1285 = vadd.f32 0.0, %v1284
  %v1286 = vpop.f32.mrf.mxu0
  %v1287 = vadd.f32 0.0, %v1286
  %1288 = vmatprep.mubr.f32.mxu0 0.0
  %1289 = vmatmul.mubr.f32.gmra.mxu0 %v121
  %v1290 = vpop.f32.mrf.mxu0
  %v1291 = vadd.f32 0.0, %v1290
  %v1292 = vpop.f32.mrf.mxu0
  %v1293 = vadd.f32 0.0, %v1292
  %1294 = vmatprep.mubr.f32.mxu0 0.0
  %1295 = vmatmul.mubr.f32.gmra.mxu0 %v124
  %v1296 = vpop.f32.mrf.mxu0
  %v1297 = vadd.f32 0.0, %v1296
  %v1298 = vpop.f32.mrf.mxu0
  %v1299 = vadd.f32 0.0, %v1298
  %1300 = vmatprep.mubr.f32.mxu0 0.0
  %1301 = vmatmul.mubr.f32.gmra.mxu0 %v127
  %v1302 = vpop.f32.mrf.mxu0
  %v1303 = vadd.f32 0.0, %v1302
  %v1304 = vpop.f32.mrf.mxu0
  %v1305 = vadd.f32 0.0, %v1304
  %1306 = vmatprep.mubr.f32.mxu0 0.0
  %1307 = vmatmul.mubr.f32.gmra.mxu0 %v130
  %v1308 = vpop.f32.mrf.mxu0
  %v1309 = vadd.f32 0.0, %v1308
  %v1310 = vpop.f32.mrf.mxu0
  %v1311 = vadd.f32 0.0, %v1310
  %1312 = vmatprep.mubr.f32.mxu0 0.0
  %1313 = vmatmul.mubr.f32.gmra.mxu0 %v133
  %v1314 = vpop.f32.mrf.mxu0
  %v1315 = vadd.f32 0.0, %v1314
  %v1316 = vpop.f32.mrf.mxu0
  %v1317 = vadd.f32 0.0, %v1316
  %1318 = vmatprep.mubr.f32.mxu0 0.0
  %1319 = vmatmul.mubr.f32.gmra.mxu0 %v136
  %v1320 = vpop.f32.mrf.mxu0
  %v1321 = vadd.f32 0.0, %v1320
  %v1322 = vpop.f32.mrf.mxu0
  %v1323 = vadd.f32 0.0, %v1322
  %1324 = vmatprep.mubr.f32.mxu0 0.0
  %1325 = vmatmul.mubr.f32.gmra.mxu0 %v139
  %v1326 = vpop.f32.mrf.mxu0
  %v1327 = vadd.f32 0.0, %v1326
  %v1328 = vpop.f32.mrf.mxu0
  %v1329 = vadd.f32 0.0, %v1328
  %1330 = vmatprep.mubr.f32.mxu0 0.0
  %1331 = vmatmul.mubr.f32.gmra.mxu0 %v142
  %v1332 = vpop.f32.mrf.mxu0
  %v1333 = vadd.f32 0.0, %v1332
  %v1334 = vpop.f32.mrf.mxu0
  %v1335 = vadd.f32 0.0, %v1334
  %1336 = vmatprep.mubr.f32.mxu0 0.0
  %1337 = vmatmul.mubr.f32.gmra.mxu0 %v588
  %v1338 = vpop.f32.mrf.mxu0
  %v1339 = vadd.f32 0.0, %v1338
  %v1340 = vpop.f32.mrf.mxu0
  %v1341 = vadd.f32 0.0, %v1340
  %1342 = vmatprep.mubr.f32.mxu0 0.0
  %1343 = vmatmul.mubr.f32.gmra.mxu0 %v863
  %v1344 = vpop.f32.mrf.mxu0
  %v1345 = vadd.f32 0.0, %v1344
  %v1346 = vpop.f32.mrf.mxu0
  %v1347 = vadd.f32 0.0, %v1346
  %1348 = vmatprep.mubr.f32.mxu0 0.0
  %1349 = vmatmul.mubr.f32.gmra.mxu0 %v1138
  %v1350 = vpop.f32.mrf.mxu0
  %v1351 = vadd.f32 0.0, %v1350
  %v1352 = vpop.f32.mrf.mxu0
  %v1353 = vadd.f32 0.0, %v1352
  %1354 = vdwg.mxu0
  %v1355 = vadd.f32 %v1080, %v1213
  %v1356 = vadd.f32 %v1081, %v1215
  %v1357 = vadd.f32 %v1082, %v1219
  %v1358 = vadd.f32 %v1083, %v1221
  %v1359 = vadd.f32 %v1084, %v1225
  %v1360 = vadd.f32 %v1085, %v1227
  %v1361 = vadd.f32 %v1086, %v1231
  %v1362 = vadd.f32 %v1087, %v1233
  %v1363 = vadd.f32 %v1088, %v1237
  %v1364 = vadd.f32 %v1089, %v1239
  %v1365 = vadd.f32 %v1090, %v1243
  %v1366 = vadd.f32 %v1091, %v1245
  %v1367 = vadd.f32 %v1092, %v1249
  %v1368 = vadd.f32 %v1093, %v1251
  %v1369 = vadd.f32 %v1094, %v1255
  %v1370 = vadd.f32 %v1095, %v1257
  %v1371 = vadd.f32 %v1096, %v1261
  %v1372 = vadd.f32 %v1097, %v1263
  %v1373 = vadd.f32 %v1098, %v1267
  %v1374 = vadd.f32 %v1099, %v1269
  %v1375 = vadd.f32 %v1100, %v1273
  %v1376 = vadd.f32 %v1101, %v1275
  %v1377 = vadd.f32 %v1102, %v1279
  %v1378 = vadd.f32 %v1103, %v1281
  %v1379 = vadd.f32 %v1104, %v1285
  %v1380 = vadd.f32 %v1105, %v1287
  %v1381 = vadd.f32 %v1106, %v1291
  %v1382 = vadd.f32 %v1107, %v1293
  %v1383 = vadd.f32 %v1108, %v1297
  %v1384 = vadd.f32 %v1109, %v1299
  %v1385 = vadd.f32 %v1110, %v1303
  %v1386 = vadd.f32 %v1111, %v1305
  %v1387 = vadd.f32 %v1112, %v1309
  %v1388 = vadd.f32 %v1113, %v1311
  %v1389 = vadd.f32 %v1114, %v1315
  %v1390 = vadd.f32 %v1115, %v1317
  %v1391 = vadd.f32 %v1116, %v1321
  %v1392 = vadd.f32 %v1117, %v1323
  %v1393 = vadd.f32 %v1118, %v1327
  %v1394 = vadd.f32 %v1119, %v1329
  %v1395 = vadd.f32 %v1120, %v1333
  %v1396 = vadd.f32 %v1121, %v1335
  %v1397 = vadd.f32 %v1122, %v1339
  %v1398 = vadd.f32 %v1123, %v1341
  %v1399 = vadd.f32 %v1124, %v1345
  %v1400 = vadd.f32 %v1125, %v1347
  %v1401 = vadd.f32 %v1126, %v1351
  %v1402 = vadd.f32 %v1127, %v1353
  %v1403 = vld [vmem:[%s2] sm:$0x1]
  %v1404 = vmax.f32 %v1355, %v1357
  %v1405 = vmax.f32 %v1356, %v1358
  %v1406 = vmax.f32 %v1404, %v1405
  %v1408 = vlaneseq
  %v1409 = vshrl.u32 %v1408, 7
  %v1410 = vsub.s32 0, %v1409
  %v1411 = vrot.slane %v1403, %v1410
  %v1413 = vadd.f32 %v1406, %v1411
  %v1414 = vmax.f32 %v1413, 0.0
  %v1415 = vmax.f32 %v1359, %v1361
  %v1416 = vmax.f32 %v1360, %v1362
  %v1417 = vmax.f32 %v1415, %v1416
  %v1418 = vadd.f32 %v1417, %v1411
  %v1419 = vmax.f32 %v1418, 0.0
  %v1420 = vmax.f32 %v1363, %v1365
  %v1421 = vmax.f32 %v1364, %v1366
  %v1422 = vmax.f32 %v1420, %v1421
  %v1423 = vadd.f32 %v1422, %v1411
  %v1424 = vmax.f32 %v1423, 0.0
  %v1425 = vmax.f32 %v1367, %v1369
  %v1426 = vmax.f32 %v1368, %v1370
  %v1427 = vmax.f32 %v1425, %v1426
  %v1428 = vadd.f32 %v1427, %v1411
  %v1429 = vmax.f32 %v1428, 0.0
  %v1430 = vmax.f32 %v1371, %v1373
  %v1431 = vmax.f32 %v1372, %v1374
  %v1432 = vmax.f32 %v1430, %v1431
  %v1433 = vadd.f32 %v1432, %v1411
  %v1434 = vmax.f32 %v1433, 0.0
  %v1435 = vmax.f32 %v1375, %v1377
  %v1436 = vmax.f32 %v1376, %v1378
  %v1437 = vmax.f32 %v1435, %v1436
  %v1438 = vadd.f32 %v1437, %v1411
  %v1439 = vmax.f32 %v1438, 0.0
  %v1440 = vmax.f32 %v1379, %v1381
  %v1441 = vmax.f32 %v1380, %v1382
  %v1442 = vmax.f32 %v1440, %v1441
  %v1443 = vadd.f32 %v1442, %v1411
  %v1444 = vmax.f32 %v1443, 0.0
  %v1445 = vmax.f32 %v1383, %v1385
  %v1446 = vmax.f32 %v1384, %v1386
  %v1447 = vmax.f32 %v1445, %v1446
  %v1448 = vadd.f32 %v1447, %v1411
  %v1449 = vmax.f32 %v1448, 0.0
  %v1450 = vmax.f32 %v1387, %v1389
  %v1451 = vmax.f32 %v1388, %v1390
  %v1452 = vmax.f32 %v1450, %v1451
  %v1453 = vadd.f32 %v1452, %v1411
  %v1454 = vmax.f32 %v1453, 0.0
  %v1455 = vmax.f32 %v1391, %v1393
  %v1456 = vmax.f32 %v1392, %v1394
  %v1457 = vmax.f32 %v1455, %v1456
  %v1458 = vadd.f32 %v1457, %v1411
  %v1459 = vmax.f32 %v1458, 0.0
  %v1460 = vmax.f32 %v1395, %v1397
  %v1461 = vmax.f32 %v1396, %v1398
  %v1462 = vmax.f32 %v1460, %v1461
  %v1463 = vadd.f32 %v1462, %v1411
  %v1464 = vmax.f32 %v1463, 0.0
  %v1465 = vmax.f32 %v1399, %v1401
  %v1466 = vmax.f32 %v1400, %v1402
  %v1467 = vmax.f32 %v1465, %v1466
  %v1468 = vadd.f32 %v1467, %v1411
  %v1469 = vmax.f32 %v1468, 0.0
  %v1470 = vld [vmem:[%s3] sm:$0xff]
  %v1471 = vld [vmem:[%s3 + $0x8] sm:$0xff]
  %v1472 = vld [vmem:[%s3 + $0x10] sm:$0xff]
  %v1473 = vld [vmem:[%s3 + $0x18] sm:$0xff]
  %v1474 = vld [vmem:[%s3 + $0x20] sm:$0xff]
  %v1475 = vld [vmem:[%s3 + $0x28] sm:$0xff]
  %v1476 = vld [vmem:[%s3 + $0x30] sm:$0xff]
  %v1477 = vld [vmem:[%s3 + $0x38] sm:$0xff]
  %v1478 = vld [vmem:[%s3 + $0x40] sm:$0xff]
  %v1479 = vld [vmem:[%s3 + $0x48] sm:$0xff]
  %v1480 = vld [vmem:[%s3 + $0x50] sm:$0xff]
  %v1481 = vld [vmem:[%s3 + $0x58] sm:$0xff]
  %v1482 = vld [vmem:[%s3 + $0x60] sm:$0xff]
  %v1483 = vld [vmem:[%s3 + $0x68] sm:$0xff]
  %v1484 = vld [vmem:[%s3 + $0x70] sm:$0xff]
  %v1485 = vld [vmem:[%s3 + $0x78] sm:$0xff]
  %v1486 = vld [vmem:[%s3 + $0x80] sm:$0xff]
  %v1487 = vld [vmem:[%s3 + $0x88] sm:$0xff]
  %v1488 = vld [vmem:[%s3 + $0x90] sm:$0xff]
  %v1489 = vld [vmem:[%s3 + $0x98] sm:$0xff]
  %v1490 = vld [vmem:[%s3 + $0xa0] sm:$0xff]
  %v1491 = vld [vmem:[%s3 + $0xa8] sm:$0xff]
  %v1492 = vld [vmem:[%s3 + $0xb0] sm:$0xff]
  %v1493 = vld [vmem:[%s3 + $0xb8] sm:$0xff]
  %v1494 = vld [vmem:[%s3 + $0xc0] sm:$0xff]
  %v1495 = vld [vmem:[%s3 + $0xc8] sm:$0xff]
  %v1496 = vld [vmem:[%s3 + $0xd0] sm:$0xff]
  %v1497 = vld [vmem:[%s3 + $0xd8] sm:$0xff]
  %v1498 = vld [vmem:[%s3 + $0xe0] sm:$0xff]
  %v1499 = vld [vmem:[%s3 + $0xe8] sm:$0xff]
  %v1500 = vld [vmem:[%s3 + $0xf0] sm:$0xff]
  %v1501 = vld [vmem:[%s3 + $0xf8] sm:$0xff]
  %v1502 = vld [vmem:[%s3 + $0x100] sm:$0xff]
  %v1503 = vld [vmem:[%s3 + $0x108] sm:$0xff]
  %v1504 = vld [vmem:[%s3 + $0x110] sm:$0xff]
  %v1505 = vld [vmem:[%s3 + $0x118] sm:$0xff]
  %v1506 = vld [vmem:[%s3 + $0x120] sm:$0xff]
  %v1507 = vld [vmem:[%s3 + $0x128] sm:$0xff]
  %v1508 = vld [vmem:[%s3 + $0x130] sm:$0xff]
  %v1509 = vld [vmem:[%s3 + $0x138] sm:$0xff]
  %v1510 = vld [vmem:[%s3 + $0x140] sm:$0xff]
  %v1511 = vld [vmem:[%s3 + $0x148] sm:$0xff]
  %v1512 = vld [vmem:[%s3 + $0x150] sm:$0xff]
  %v1513 = vld [vmem:[%s3 + $0x158] sm:$0xff]
  %v1514 = vld [vmem:[%s3 + $0x160] sm:$0xff]
  %v1515 = vld [vmem:[%s3 + $0x168] sm:$0xff]
  %v1516 = vld [vmem:[%s3 + $0x170] sm:$0xff]
  %v1517 = vld [vmem:[%s3 + $0x178] sm:$0xff]
  %v1518 = vld [vmem:[%s3 + $0x180] sm:$0xff]
  %v1519 = vld [vmem:[%s3 + $0x188] sm:$0xff]
  %v1520 = vld [vmem:[%s3 + $0x190] sm:$0xff]
  %v1521 = vld [vmem:[%s3 + $0x198] sm:$0xff]
  %v1522 = vld [vmem:[%s3 + $0x1a0] sm:$0xff]
  %v1523 = vld [vmem:[%s3 + $0x1a8] sm:$0xff]
  %v1524 = vld [vmem:[%s3 + $0x1b0] sm:$0xff]
  %v1525 = vld [vmem:[%s3 + $0x1b8] sm:$0xff]
  %v1526 = vld [vmem:[%s3 + $0x1c0] sm:$0xff]
  %v1527 = vld [vmem:[%s3 + $0x1c8] sm:$0xff]
  %v1528 = vld [vmem:[%s3 + $0x1d0] sm:$0xff]
  %v1529 = vld [vmem:[%s3 + $0x1d8] sm:$0xff]
  %v1530 = vld [vmem:[%s3 + $0x1e0] sm:$0xff]
  %v1531 = vld [vmem:[%s3 + $0x1e8] sm:$0xff]
  %v1532 = vld [vmem:[%s3 + $0x1f0] sm:$0xff]
  %v1533 = vld [vmem:[%s3 + $0x1f8] sm:$0xff]
  %v1534 = vld [vmem:[%s3 + $0x200] sm:$0xff]
  %v1535 = vld [vmem:[%s3 + $0x208] sm:$0xff]
  %v1536 = vld [vmem:[%s3 + $0x210] sm:$0xff]
  %v1537 = vld [vmem:[%s3 + $0x218] sm:$0xff]
  %v1538 = vld [vmem:[%s3 + $0x220] sm:$0xff]
  %v1539 = vld [vmem:[%s3 + $0x228] sm:$0xff]
  %v1540 = vld [vmem:[%s3 + $0x230] sm:$0xff]
  %v1541 = vld [vmem:[%s3 + $0x238] sm:$0xff]
  %v1542 = vld [vmem:[%s3 + $0x240] sm:$0xff]
  %v1543 = vld [vmem:[%s3 + $0x248] sm:$0xff]
  %v1544 = vld [vmem:[%s3 + $0x250] sm:$0xff]
  %v1545 = vld [vmem:[%s3 + $0x258] sm:$0xff]
  %v1546 = vld [vmem:[%s3 + $0x260] sm:$0xff]
  %v1547 = vld [vmem:[%s3 + $0x268] sm:$0xff]
  %v1548 = vld [vmem:[%s3 + $0x270] sm:$0xff]
  %v1549 = vld [vmem:[%s3 + $0x278] sm:$0xff]
  %v1550 = vld [vmem:[%s3 + $0x280] sm:$0xff]
  %v1551 = vld [vmem:[%s3 + $0x288] sm:$0xff]
  %v1552 = vld [vmem:[%s3 + $0x290] sm:$0xff]
  %v1553 = vld [vmem:[%s3 + $0x298] sm:$0xff]
  %v1554 = vld [vmem:[%s3 + $0x2a0] sm:$0xff]
  %v1555 = vld [vmem:[%s3 + $0x2a8] sm:$0xff]
  %v1556 = vld [vmem:[%s3 + $0x2b0] sm:$0xff]
  %v1557 = vld [vmem:[%s3 + $0x2b8] sm:$0xff]
  %v1558 = vld [vmem:[%s3 + $0x2c0] sm:$0xff]
  %v1559 = vld [vmem:[%s3 + $0x2c8] sm:$0xff]
  %v1560 = vld [vmem:[%s3 + $0x2d0] sm:$0xff]
  %v1561 = vld [vmem:[%s3 + $0x2d8] sm:$0xff]
  %v1562 = vld [vmem:[%s3 + $0x2e0] sm:$0xff]
  %v1563 = vld [vmem:[%s3 + $0x2e8] sm:$0xff]
  %v1564 = vld [vmem:[%s3 + $0x2f0] sm:$0xff]
  %v1565 = vld [vmem:[%s3 + $0x2f8] sm:$0xff]
  %v1566 = vld [vmem:[%s3 + $0x300] sm:$0xff]
  %v1567 = vld [vmem:[%s3 + $0x308] sm:$0xff]
  %v1568 = vld [vmem:[%s3 + $0x310] sm:$0xff]
  %v1569 = vld [vmem:[%s3 + $0x318] sm:$0xff]
  %v1570 = vld [vmem:[%s3 + $0x320] sm:$0xff]
  %v1571 = vld [vmem:[%s3 + $0x328] sm:$0xff]
  %v1572 = vld [vmem:[%s3 + $0x330] sm:$0xff]
  %v1573 = vld [vmem:[%s3 + $0x338] sm:$0xff]
  %v1574 = vld [vmem:[%s3 + $0x340] sm:$0xff]
  %v1575 = vld [vmem:[%s3 + $0x348] sm:$0xff]
  %v1576 = vld [vmem:[%s3 + $0x350] sm:$0xff]
  %v1577 = vld [vmem:[%s3 + $0x358] sm:$0xff]
  %v1578 = vld [vmem:[%s3 + $0x360] sm:$0xff]
  %v1579 = vld [vmem:[%s3 + $0x368] sm:$0xff]
  %v1580 = vld [vmem:[%s3 + $0x370] sm:$0xff]
  %v1581 = vld [vmem:[%s3 + $0x378] sm:$0xff]
  %v1582 = vld [vmem:[%s3 + $0x380] sm:$0xff]
  %v1583 = vld [vmem:[%s3 + $0x388] sm:$0xff]
  %v1584 = vld [vmem:[%s3 + $0x390] sm:$0xff]
  %v1585 = vld [vmem:[%s3 + $0x398] sm:$0xff]
  %v1586 = vld [vmem:[%s3 + $0x3a0] sm:$0xff]
  %v1587 = vld [vmem:[%s3 + $0x3a8] sm:$0xff]
  %v1588 = vld [vmem:[%s3 + $0x3b0] sm:$0xff]
  %v1589 = vld [vmem:[%s3 + $0x3b8] sm:$0xff]
  %v1590 = vld [vmem:[%s3 + $0x3c0] sm:$0xff]
  %v1591 = vld [vmem:[%s3 + $0x3c8] sm:$0xff]
  %v1592 = vld [vmem:[%s3 + $0x3d0] sm:$0xff]
  %v1593 = vld [vmem:[%s3 + $0x3d8] sm:$0xff]
  %v1594 = vld [vmem:[%s3 + $0x3e0] sm:$0xff]
  %v1595 = vld [vmem:[%s3 + $0x3e8] sm:$0xff]
  %v1596 = vld [vmem:[%s3 + $0x3f0] sm:$0xff]
  %v1597 = vld [vmem:[%s3 + $0x3f8] sm:$0xff]
  %v1598 = vld [vmem:[%s3 + $0x400] sm:$0xff]
  %v1599 = vld [vmem:[%s3 + $0x408] sm:$0xff]
  %v1600 = vld [vmem:[%s3 + $0x410] sm:$0xff]
  %v1601 = vld [vmem:[%s3 + $0x418] sm:$0xff]
  %v1602 = vld [vmem:[%s3 + $0x420] sm:$0xff]
  %v1603 = vld [vmem:[%s3 + $0x428] sm:$0xff]
  %v1604 = vld [vmem:[%s3 + $0x430] sm:$0xff]
  %v1605 = vld [vmem:[%s3 + $0x438] sm:$0xff]
  %v1606 = vld [vmem:[%s3 + $0x440] sm:$0xff]
  %v1607 = vld [vmem:[%s3 + $0x448] sm:$0xff]
  %v1608 = vld [vmem:[%s3 + $0x450] sm:$0xff]
  %v1609 = vld [vmem:[%s3 + $0x458] sm:$0xff]
  %v1610 = vld [vmem:[%s3 + $0x460] sm:$0xff]
  %v1611 = vld [vmem:[%s3 + $0x468] sm:$0xff]
  %v1612 = vld [vmem:[%s3 + $0x470] sm:$0xff]
  %v1613 = vld [vmem:[%s3 + $0x478] sm:$0xff]
  %v1614 = vld [vmem:[%s3 + $0x480] sm:$0xff]
  %v1615 = vld [vmem:[%s3 + $0x488] sm:$0xff]
  %v1616 = vld [vmem:[%s3 + $0x490] sm:$0xff]
  %v1617 = vld [vmem:[%s3 + $0x498] sm:$0xff]
  %v1618 = vld [vmem:[%s3 + $0x4a0] sm:$0xff]
  %v1619 = vld [vmem:[%s3 + $0x4a8] sm:$0xff]
  %v1620 = vld [vmem:[%s3 + $0x4b0] sm:$0xff]
  %v1621 = vld [vmem:[%s3 + $0x4b8] sm:$0xff]
  %v1622 = vld [vmem:[%s3 + $0x4c0] sm:$0xff]
  %v1623 = vld [vmem:[%s3 + $0x4c8] sm:$0xff]
  %v1624 = vld [vmem:[%s3 + $0x4d0] sm:$0xff]
  %v1625 = vld [vmem:[%s3 + $0x4d8] sm:$0xff]
  %v1626 = vld [vmem:[%s3 + $0x4e0] sm:$0xff]
  %v1627 = vld [vmem:[%s3 + $0x4e8] sm:$0xff]
  %v1628 = vld [vmem:[%s3 + $0x4f0] sm:$0xff]
  %v1629 = vld [vmem:[%s3 + $0x4f8] sm:$0xff]
  %v1630 = vld [vmem:[%s3 + $0x500] sm:$0xff]
  %v1631 = vld [vmem:[%s3 + $0x508] sm:$0xff]
  %v1632 = vld [vmem:[%s3 + $0x510] sm:$0xff]
  %v1633 = vld [vmem:[%s3 + $0x518] sm:$0xff]
  %v1634 = vld [vmem:[%s3 + $0x520] sm:$0xff]
  %v1635 = vld [vmem:[%s3 + $0x528] sm:$0xff]
  %v1636 = vld [vmem:[%s3 + $0x530] sm:$0xff]
  %v1637 = vld [vmem:[%s3 + $0x538] sm:$0xff]
  %v1638 = vld [vmem:[%s3 + $0x540] sm:$0xff]
  %v1639 = vld [vmem:[%s3 + $0x548] sm:$0xff]
  %v1640 = vld [vmem:[%s3 + $0x550] sm:$0xff]
  %v1641 = vld [vmem:[%s3 + $0x558] sm:$0xff]
  %v1642 = vld [vmem:[%s3 + $0x560] sm:$0xff]
  %v1643 = vld [vmem:[%s3 + $0x568] sm:$0xff]
  %v1644 = vld [vmem:[%s3 + $0x570] sm:$0xff]
  %v1645 = vld [vmem:[%s3 + $0x578] sm:$0xff]
  %v1646 = vld [vmem:[%s3 + $0x580] sm:$0xff]
  %v1647 = vld [vmem:[%s3 + $0x588] sm:$0xff]
  %v1648 = vld [vmem:[%s3 + $0x590] sm:$0xff]
  %v1649 = vld [vmem:[%s3 + $0x598] sm:$0xff]
  %v1650 = vld [vmem:[%s3 + $0x5a0] sm:$0xff]
  %v1651 = vld [vmem:[%s3 + $0x5a8] sm:$0xff]
  %v1652 = vld [vmem:[%s3 + $0x5b0] sm:$0xff]
  %v1653 = vld [vmem:[%s3 + $0x5b8] sm:$0xff]
  %v1654 = vld [vmem:[%s3 + $0x5c0] sm:$0xff]
  %v1655 = vld [vmem:[%s3 + $0x5c8] sm:$0xff]
  %v1656 = vld [vmem:[%s3 + $0x5d0] sm:$0xff]
  %v1657 = vld [vmem:[%s3 + $0x5d8] sm:$0xff]
  %v1658 = vld [vmem:[%s3 + $0x5e0] sm:$0xff]
  %v1659 = vld [vmem:[%s3 + $0x5e8] sm:$0xff]
  %v1660 = vld [vmem:[%s3 + $0x5f0] sm:$0xff]
  %v1661 = vld [vmem:[%s3 + $0x5f8] sm:$0xff]
  %v1662 = vld [vmem:[%s4] sm:$0x1]
  %v1664 = vlaneseq
  %v1665 = vshrl.u32 %v1664, 7
  %v1666 = vsub.s32 0, %v1665
  %v1667 = vrot.slane %v1662, %v1666
  %1669 = vmatprep.subr.mxu0 0.0
  %1670 = vmatpush1.msra.mxu0 %v1485
  %1671 = vmatprep.subr.mxu0 0.0
  %1672 = vmatpush1.msra.mxu0 %v1484
  %1673 = vmatprep.subr.mxu0 0.0
  %1674 = vmatpush1.msra.mxu0 %v1483
  %1675 = vmatprep.subr.mxu0 0.0
  %1676 = vmatpush1.msra.mxu0 %v1482
  %1677 = vmatprep.subr.mxu0 0.0
  %1678 = vmatpush1.msra.mxu0 %v1481
  %1679 = vmatprep.subr.mxu0 0.0
  %1680 = vmatpush1.msra.mxu0 %v1480
  %1681 = vmatprep.subr.mxu0 0.0
  %1682 = vmatpush1.msra.mxu0 %v1479
  %1683 = vmatprep.subr.mxu0 0.0
  %1684 = vmatpush1.msra.mxu0 %v1478
  %1685 = vmatprep.subr.mxu0 0.0
  %1686 = vmatpush1.msra.mxu0 %v1477
  %1687 = vmatprep.subr.mxu0 0.0
  %1688 = vmatpush1.msra.mxu0 %v1476
  %1689 = vmatprep.subr.mxu0 0.0
  %1690 = vmatpush1.msra.mxu0 %v1475
  %1691 = vmatprep.subr.mxu0 0.0
  %1692 = vmatpush1.msra.mxu0 %v1474
  %1693 = vmatprep.subr.mxu0 0.0
  %1694 = vmatpush1.msra.mxu0 %v1473
  %1695 = vmatprep.subr.mxu0 0.0
  %1696 = vmatpush1.msra.mxu0 %v1472
  %1697 = vmatprep.subr.mxu0 0.0
  %1698 = vmatpush1.msra.mxu0 %v1471
  %1699 = vmatprep.subr.mxu0 0.0
  %1700 = vmatpush1.msra.mxu0 %v1470
  %1701 = vmatprep.subr.mxu0 0.0
  %1702 = vmatpush2.msra.mxu0 %v1501
  %1703 = vmatprep.subr.mxu0 0.0
  %1704 = vmatpush2.msra.mxu0 %v1500
  %1705 = vmatprep.subr.mxu0 0.0
  %1706 = vmatpush2.msra.mxu0 %v1499
  %1707 = vmatprep.subr.mxu0 0.0
  %1708 = vmatpush2.msra.mxu0 %v1498
  %1709 = vmatprep.subr.mxu0 0.0
  %1710 = vmatpush2.msra.mxu0 %v1497
  %1711 = vmatprep.subr.mxu0 0.0
  %1712 = vmatpush2.msra.mxu0 %v1496
  %1713 = vmatprep.subr.mxu0 0.0
  %1714 = vmatpush2.msra.mxu0 %v1495
  %1715 = vmatprep.subr.mxu0 0.0
  %1716 = vmatpush2.msra.mxu0 %v1494
  %1717 = vmatprep.subr.mxu0 0.0
  %1718 = vmatpush2.msra.mxu0 %v1493
  %1719 = vmatprep.subr.mxu0 0.0
  %1720 = vmatpush2.msra.mxu0 %v1492
  %1721 = vmatprep.subr.mxu0 0.0
  %1722 = vmatpush2.msra.mxu0 %v1491
  %1723 = vmatprep.subr.mxu0 0.0
  %1724 = vmatpush2.msra.mxu0 %v1490
  %1725 = vmatprep.subr.mxu0 0.0
  %1726 = vmatpush2.msra.mxu0 %v1489
  %1727 = vmatprep.subr.mxu0 0.0
  %1728 = vmatpush2.msra.mxu0 %v1488
  %1729 = vmatprep.subr.mxu0 0.0
  %1730 = vmatpush2.msra.mxu0 %v1487
  %1731 = vmatprep.subr.mxu0 0.0
  %1732 = vmatpush2.msra.mxu0 %v1486
  %1733 = vmatprep.mubr.f32.mxu0 %v1419
  %1734 = vmatmul.mubr.f32.gmra.mxu0 %v1414
  %v1735 = vpop.f32.mrf.mxu0
  %v1736 = vadd.f32 %v1667, %v1735
  %v1737 = vpop.f32.mrf.mxu0
  %1738 = vdwg.mxu0
  %1739 = vmatprep.subr.mxu0 0.0
  %1740 = vmatpush1.msra.mxu0 %v1517
  %1741 = vmatprep.subr.mxu0 0.0
  %1742 = vmatpush1.msra.mxu0 %v1516
  %1743 = vmatprep.subr.mxu0 0.0
  %1744 = vmatpush1.msra.mxu0 %v1515
  %1745 = vmatprep.subr.mxu0 0.0
  %1746 = vmatpush1.msra.mxu0 %v1514
  %1747 = vmatprep.subr.mxu0 0.0
  %1748 = vmatpush1.msra.mxu0 %v1513
  %1749 = vmatprep.subr.mxu0 0.0
  %1750 = vmatpush1.msra.mxu0 %v1512
  %1751 = vmatprep.subr.mxu0 0.0
  %1752 = vmatpush1.msra.mxu0 %v1511
  %1753 = vmatprep.subr.mxu0 0.0
  %1754 = vmatpush1.msra.mxu0 %v1510
  %1755 = vmatprep.subr.mxu0 0.0
  %1756 = vmatpush1.msra.mxu0 %v1509
  %1757 = vmatprep.subr.mxu0 0.0
  %1758 = vmatpush1.msra.mxu0 %v1508
  %1759 = vmatprep.subr.mxu0 0.0
  %1760 = vmatpush1.msra.mxu0 %v1507
  %1761 = vmatprep.subr.mxu0 0.0
  %1762 = vmatpush1.msra.mxu0 %v1506
  %1763 = vmatprep.subr.mxu0 0.0
  %1764 = vmatpush1.msra.mxu0 %v1505
  %1765 = vmatprep.subr.mxu0 0.0
  %1766 = vmatpush1.msra.mxu0 %v1504
  %1767 = vmatprep.subr.mxu0 0.0
  %1768 = vmatpush1.msra.mxu0 %v1503
  %1769 = vmatprep.subr.mxu0 0.0
  %1770 = vmatpush1.msra.mxu0 %v1502
  %1771 = vmatprep.subr.mxu0 0.0
  %1772 = vmatpush2.msra.mxu0 %v1533
  %1773 = vmatprep.subr.mxu0 0.0
  %1774 = vmatpush2.msra.mxu0 %v1532
  %1775 = vmatprep.subr.mxu0 0.0
  %1776 = vmatpush2.msra.mxu0 %v1531
  %1777 = vmatprep.subr.mxu0 0.0
  %1778 = vmatpush2.msra.mxu0 %v1530
  %1779 = vmatprep.subr.mxu0 0.0
  %1780 = vmatpush2.msra.mxu0 %v1529
  %1781 = vmatprep.subr.mxu0 0.0
  %1782 = vmatpush2.msra.mxu0 %v1528
  %1783 = vmatprep.subr.mxu0 0.0
  %1784 = vmatpush2.msra.mxu0 %v1527
  %1785 = vmatprep.subr.mxu0 0.0
  %1786 = vmatpush2.msra.mxu0 %v1526
  %1787 = vmatprep.subr.mxu0 0.0
  %1788 = vmatpush2.msra.mxu0 %v1525
  %1789 = vmatprep.subr.mxu0 0.0
  %1790 = vmatpush2.msra.mxu0 %v1524
  %1791 = vmatprep.subr.mxu0 0.0
  %1792 = vmatpush2.msra.mxu0 %v1523
  %1793 = vmatprep.subr.mxu0 0.0
  %1794 = vmatpush2.msra.mxu0 %v1522
  %1795 = vmatprep.subr.mxu0 0.0
  %1796 = vmatpush2.msra.mxu0 %v1521
  %1797 = vmatprep.subr.mxu0 0.0
  %1798 = vmatpush2.msra.mxu0 %v1520
  %1799 = vmatprep.subr.mxu0 0.0
  %1800 = vmatpush2.msra.mxu0 %v1519
  %1801 = vmatprep.subr.mxu0 0.0
  %1802 = vmatpush2.msra.mxu0 %v1518
  %1803 = vmatprep.mubr.f32.mxu0 %v1429
  %1804 = vmatmul.mubr.f32.gmra.mxu0 %v1424
  %v1805 = vpop.f32.mrf.mxu0
  %v1806 = vadd.f32 %v1736, %v1805
  %v1807 = vpop.f32.mrf.mxu0
  %1808 = vdwg.mxu0
  %1809 = vmatprep.subr.mxu0 0.0
  %1810 = vmatpush1.msra.mxu0 %v1549
  %1811 = vmatprep.subr.mxu0 0.0
  %1812 = vmatpush1.msra.mxu0 %v1548
  %1813 = vmatprep.subr.mxu0 0.0
  %1814 = vmatpush1.msra.mxu0 %v1547
  %1815 = vmatprep.subr.mxu0 0.0
  %1816 = vmatpush1.msra.mxu0 %v1546
  %1817 = vmatprep.subr.mxu0 0.0
  %1818 = vmatpush1.msra.mxu0 %v1545
  %1819 = vmatprep.subr.mxu0 0.0
  %1820 = vmatpush1.msra.mxu0 %v1544
  %1821 = vmatprep.subr.mxu0 0.0
  %1822 = vmatpush1.msra.mxu0 %v1543
  %1823 = vmatprep.subr.mxu0 0.0
  %1824 = vmatpush1.msra.mxu0 %v1542
  %1825 = vmatprep.subr.mxu0 0.0
  %1826 = vmatpush1.msra.mxu0 %v1541
  %1827 = vmatprep.subr.mxu0 0.0
  %1828 = vmatpush1.msra.mxu0 %v1540
  %1829 = vmatprep.subr.mxu0 0.0
  %1830 = vmatpush1.msra.mxu0 %v1539
  %1831 = vmatprep.subr.mxu0 0.0
  %1832 = vmatpush1.msra.mxu0 %v1538
  %1833 = vmatprep.subr.mxu0 0.0
  %1834 = vmatpush1.msra.mxu0 %v1537
  %1835 = vmatprep.subr.mxu0 0.0
  %1836 = vmatpush1.msra.mxu0 %v1536
  %1837 = vmatprep.subr.mxu0 0.0
  %1838 = vmatpush1.msra.mxu0 %v1535
  %1839 = vmatprep.subr.mxu0 0.0
  %1840 = vmatpush1.msra.mxu0 %v1534
  %1841 = vmatprep.subr.mxu0 0.0
  %1842 = vmatpush2.msra.mxu0 %v1565
  %1843 = vmatprep.subr.mxu0 0.0
  %1844 = vmatpush2.msra.mxu0 %v1564
  %1845 = vmatprep.subr.mxu0 0.0
  %1846 = vmatpush2.msra.mxu0 %v1563
  %1847 = vmatprep.subr.mxu0 0.0
  %1848 = vmatpush2.msra.mxu0 %v1562
  %1849 = vmatprep.subr.mxu0 0.0
  %1850 = vmatpush2.msra.mxu0 %v1561
  %1851 = vmatprep.subr.mxu0 0.0
  %1852 = vmatpush2.msra.mxu0 %v1560
  %1853 = vmatprep.subr.mxu0 0.0
  %1854 = vmatpush2.msra.mxu0 %v1559
  %1855 = vmatprep.subr.mxu0 0.0
  %1856 = vmatpush2.msra.mxu0 %v1558
  %1857 = vmatprep.subr.mxu0 0.0
  %1858 = vmatpush2.msra.mxu0 %v1557
  %1859 = vmatprep.subr.mxu0 0.0
  %1860 = vmatpush2.msra.mxu0 %v1556
  %1861 = vmatprep.subr.mxu0 0.0
  %1862 = vmatpush2.msra.mxu0 %v1555
  %1863 = vmatprep.subr.mxu0 0.0
  %1864 = vmatpush2.msra.mxu0 %v1554
  %1865 = vmatprep.subr.mxu0 0.0
  %1866 = vmatpush2.msra.mxu0 %v1553
  %1867 = vmatprep.subr.mxu0 0.0
  %1868 = vmatpush2.msra.mxu0 %v1552
  %1869 = vmatprep.subr.mxu0 0.0
  %1870 = vmatpush2.msra.mxu0 %v1551
  %1871 = vmatprep.subr.mxu0 0.0
  %1872 = vmatpush2.msra.mxu0 %v1550
  %1873 = vmatprep.mubr.f32.mxu0 %v1439
  %1874 = vmatmul.mubr.f32.gmra.mxu0 %v1434
  %v1875 = vpop.f32.mrf.mxu0
  %v1876 = vadd.f32 %v1806, %v1875
  %v1877 = vpop.f32.mrf.mxu0
  %1878 = vdwg.mxu0
  %1879 = vmatprep.subr.mxu0 0.0
  %1880 = vmatpush1.msra.mxu0 %v1581
  %1881 = vmatprep.subr.mxu0 0.0
  %1882 = vmatpush1.msra.mxu0 %v1580
  %1883 = vmatprep.subr.mxu0 0.0
  %1884 = vmatpush1.msra.mxu0 %v1579
  %1885 = vmatprep.subr.mxu0 0.0
  %1886 = vmatpush1.msra.mxu0 %v1578
  %1887 = vmatprep.subr.mxu0 0.0
  %1888 = vmatpush1.msra.mxu0 %v1577
  %1889 = vmatprep.subr.mxu0 0.0
  %1890 = vmatpush1.msra.mxu0 %v1576
  %1891 = vmatprep.subr.mxu0 0.0
  %1892 = vmatpush1.msra.mxu0 %v1575
  %1893 = vmatprep.subr.mxu0 0.0
  %1894 = vmatpush1.msra.mxu0 %v1574
  %1895 = vmatprep.subr.mxu0 0.0
  %1896 = vmatpush1.msra.mxu0 %v1573
  %1897 = vmatprep.subr.mxu0 0.0
  %1898 = vmatpush1.msra.mxu0 %v1572
  %1899 = vmatprep.subr.mxu0 0.0
  %1900 = vmatpush1.msra.mxu0 %v1571
  %1901 = vmatprep.subr.mxu0 0.0
  %1902 = vmatpush1.msra.mxu0 %v1570
  %1903 = vmatprep.subr.mxu0 0.0
  %1904 = vmatpush1.msra.mxu0 %v1569
  %1905 = vmatprep.subr.mxu0 0.0
  %1906 = vmatpush1.msra.mxu0 %v1568
  %1907 = vmatprep.subr.mxu0 0.0
  %1908 = vmatpush1.msra.mxu0 %v1567
  %1909 = vmatprep.subr.mxu0 0.0
  %1910 = vmatpush1.msra.mxu0 %v1566
  %1911 = vmatprep.subr.mxu0 0.0
  %1912 = vmatpush2.msra.mxu0 %v1597
  %1913 = vmatprep.subr.mxu0 0.0
  %1914 = vmatpush2.msra.mxu0 %v1596
  %1915 = vmatprep.subr.mxu0 0.0
  %1916 = vmatpush2.msra.mxu0 %v1595
  %1917 = vmatprep.subr.mxu0 0.0
  %1918 = vmatpush2.msra.mxu0 %v1594
  %1919 = vmatprep.subr.mxu0 0.0
  %1920 = vmatpush2.msra.mxu0 %v1593
  %1921 = vmatprep.subr.mxu0 0.0
  %1922 = vmatpush2.msra.mxu0 %v1592
  %1923 = vmatprep.subr.mxu0 0.0
  %1924 = vmatpush2.msra.mxu0 %v1591
  %1925 = vmatprep.subr.mxu0 0.0
  %1926 = vmatpush2.msra.mxu0 %v1590
  %1927 = vmatprep.subr.mxu0 0.0
  %1928 = vmatpush2.msra.mxu0 %v1589
  %1929 = vmatprep.subr.mxu0 0.0
  %1930 = vmatpush2.msra.mxu0 %v1588
  %1931 = vmatprep.subr.mxu0 0.0
  %1932 = vmatpush2.msra.mxu0 %v1587
  %1933 = vmatprep.subr.mxu0 0.0
  %1934 = vmatpush2.msra.mxu0 %v1586
  %1935 = vmatprep.subr.mxu0 0.0
  %1936 = vmatpush2.msra.mxu0 %v1585
  %1937 = vmatprep.subr.mxu0 0.0
  %1938 = vmatpush2.msra.mxu0 %v1584
  %1939 = vmatprep.subr.mxu0 0.0
  %1940 = vmatpush2.msra.mxu0 %v1583
  %1941 = vmatprep.subr.mxu0 0.0
  %1942 = vmatpush2.msra.mxu0 %v1582
  %1943 = vmatprep.mubr.f32.mxu0 %v1449
  %1944 = vmatmul.mubr.f32.gmra.mxu0 %v1444
  %v1945 = vpop.f32.mrf.mxu0
  %v1946 = vadd.f32 %v1876, %v1945
  %v1947 = vpop.f32.mrf.mxu0
  %1948 = vdwg.mxu0
  %1949 = vmatprep.subr.mxu0 0.0
  %1950 = vmatpush1.msra.mxu0 %v1613
  %1951 = vmatprep.subr.mxu0 0.0
  %1952 = vmatpush1.msra.mxu0 %v1612
  %1953 = vmatprep.subr.mxu0 0.0
  %1954 = vmatpush1.msra.mxu0 %v1611
  %1955 = vmatprep.subr.mxu0 0.0
  %1956 = vmatpush1.msra.mxu0 %v1610
  %1957 = vmatprep.subr.mxu0 0.0
  %1958 = vmatpush1.msra.mxu0 %v1609
  %1959 = vmatprep.subr.mxu0 0.0
  %1960 = vmatpush1.msra.mxu0 %v1608
  %1961 = vmatprep.subr.mxu0 0.0
  %1962 = vmatpush1.msra.mxu0 %v1607
  %1963 = vmatprep.subr.mxu0 0.0
  %1964 = vmatpush1.msra.mxu0 %v1606
  %1965 = vmatprep.subr.mxu0 0.0
  %1966 = vmatpush1.msra.mxu0 %v1605
  %1967 = vmatprep.subr.mxu0 0.0
  %1968 = vmatpush1.msra.mxu0 %v1604
  %1969 = vmatprep.subr.mxu0 0.0
  %1970 = vmatpush1.msra.mxu0 %v1603
  %1971 = vmatprep.subr.mxu0 0.0
  %1972 = vmatpush1.msra.mxu0 %v1602
  %1973 = vmatprep.subr.mxu0 0.0
  %1974 = vmatpush1.msra.mxu0 %v1601
  %1975 = vmatprep.subr.mxu0 0.0
  %1976 = vmatpush1.msra.mxu0 %v1600
  %1977 = vmatprep.subr.mxu0 0.0
  %1978 = vmatpush1.msra.mxu0 %v1599
  %1979 = vmatprep.subr.mxu0 0.0
  %1980 = vmatpush1.msra.mxu0 %v1598
  %1981 = vmatprep.subr.mxu0 0.0
  %1982 = vmatpush2.msra.mxu0 %v1629
  %1983 = vmatprep.subr.mxu0 0.0
  %1984 = vmatpush2.msra.mxu0 %v1628
  %1985 = vmatprep.subr.mxu0 0.0
  %1986 = vmatpush2.msra.mxu0 %v1627
  %1987 = vmatprep.subr.mxu0 0.0
  %1988 = vmatpush2.msra.mxu0 %v1626
  %1989 = vmatprep.subr.mxu0 0.0
  %1990 = vmatpush2.msra.mxu0 %v1625
  %1991 = vmatprep.subr.mxu0 0.0
  %1992 = vmatpush2.msra.mxu0 %v1624
  %1993 = vmatprep.subr.mxu0 0.0
  %1994 = vmatpush2.msra.mxu0 %v1623
  %1995 = vmatprep.subr.mxu0 0.0
  %1996 = vmatpush2.msra.mxu0 %v1622
  %1997 = vmatprep.subr.mxu0 0.0
  %1998 = vmatpush2.msra.mxu0 %v1621
  %1999 = vmatprep.subr.mxu0 0.0
  %2000 = vmatpush2.msra.mxu0 %v1620
  %2001 = vmatprep.subr.mxu0 0.0
  %2002 = vmatpush2.msra.mxu0 %v1619
  %2003 = vmatprep.subr.mxu0 0.0
  %2004 = vmatpush2.msra.mxu0 %v1618
  %2005 = vmatprep.subr.mxu0 0.0
  %2006 = vmatpush2.msra.mxu0 %v1617
  %2007 = vmatprep.subr.mxu0 0.0
  %2008 = vmatpush2.msra.mxu0 %v1616
  %2009 = vmatprep.subr.mxu0 0.0
  %2010 = vmatpush2.msra.mxu0 %v1615
  %2011 = vmatprep.subr.mxu0 0.0
  %2012 = vmatpush2.msra.mxu0 %v1614
  %2013 = vmatprep.mubr.f32.mxu0 %v1459
  %2014 = vmatmul.mubr.f32.gmra.mxu0 %v1454
  %v2015 = vpop.f32.mrf.mxu0
  %v2016 = vadd.f32 %v1946, %v2015
  %v2017 = vpop.f32.mrf.mxu0
  %2018 = vdwg.mxu0
  %2019 = vmatprep.subr.mxu0 0.0
  %2020 = vmatpush1.msra.mxu0 %v1645
  %2021 = vmatprep.subr.mxu0 0.0
  %2022 = vmatpush1.msra.mxu0 %v1644
  %2023 = vmatprep.subr.mxu0 0.0
  %2024 = vmatpush1.msra.mxu0 %v1643
  %2025 = vmatprep.subr.mxu0 0.0
  %2026 = vmatpush1.msra.mxu0 %v1642
  %2027 = vmatprep.subr.mxu0 0.0
  %2028 = vmatpush1.msra.mxu0 %v1641
  %2029 = vmatprep.subr.mxu0 0.0
  %2030 = vmatpush1.msra.mxu0 %v1640
  %2031 = vmatprep.subr.mxu0 0.0
  %2032 = vmatpush1.msra.mxu0 %v1639
  %2033 = vmatprep.subr.mxu0 0.0
  %2034 = vmatpush1.msra.mxu0 %v1638
  %2035 = vmatprep.subr.mxu0 0.0
  %2036 = vmatpush1.msra.mxu0 %v1637
  %2037 = vmatprep.subr.mxu0 0.0
  %2038 = vmatpush1.msra.mxu0 %v1636
  %2039 = vmatprep.subr.mxu0 0.0
  %2040 = vmatpush1.msra.mxu0 %v1635
  %2041 = vmatprep.subr.mxu0 0.0
  %2042 = vmatpush1.msra.mxu0 %v1634
  %2043 = vmatprep.subr.mxu0 0.0
  %2044 = vmatpush1.msra.mxu0 %v1633
  %2045 = vmatprep.subr.mxu0 0.0
  %2046 = vmatpush1.msra.mxu0 %v1632
  %2047 = vmatprep.subr.mxu0 0.0
  %2048 = vmatpush1.msra.mxu0 %v1631
  %2049 = vmatprep.subr.mxu0 0.0
  %2050 = vmatpush1.msra.mxu0 %v1630
  %2051 = vmatprep.subr.mxu0 0.0
  %2052 = vmatpush2.msra.mxu0 %v1661
  %2053 = vmatprep.subr.mxu0 0.0
  %2054 = vmatpush2.msra.mxu0 %v1660
  %2055 = vmatprep.subr.mxu0 0.0
  %2056 = vmatpush2.msra.mxu0 %v1659
  %2057 = vmatprep.subr.mxu0 0.0
  %2058 = vmatpush2.msra.mxu0 %v1658
  %2059 = vmatprep.subr.mxu0 0.0
  %2060 = vmatpush2.msra.mxu0 %v1657
  %2061 = vmatprep.subr.mxu0 0.0
  %2062 = vmatpush2.msra.mxu0 %v1656
  %2063 = vmatprep.subr.mxu0 0.0
  %2064 = vmatpush2.msra.mxu0 %v1655
  %2065 = vmatprep.subr.mxu0 0.0
  %2066 = vmatpush2.msra.mxu0 %v1654
  %2067 = vmatprep.subr.mxu0 0.0
  %2068 = vmatpush2.msra.mxu0 %v1653
  %2069 = vmatprep.subr.mxu0 0.0
  %2070 = vmatpush2.msra.mxu0 %v1652
  %2071 = vmatprep.subr.mxu0 0.0
  %2072 = vmatpush2.msra.mxu0 %v1651
  %2073 = vmatprep.subr.mxu0 0.0
  %2074 = vmatpush2.msra.mxu0 %v1650
  %2075 = vmatprep.subr.mxu0 0.0
  %2076 = vmatpush2.msra.mxu0 %v1649
  %2077 = vmatprep.subr.mxu0 0.0
  %2078 = vmatpush2.msra.mxu0 %v1648
  %2079 = vmatprep.subr.mxu0 0.0
  %2080 = vmatpush2.msra.mxu0 %v1647
  %2081 = vmatprep.subr.mxu0 0.0
  %2082 = vmatpush2.msra.mxu0 %v1646
  %2083 = vmatprep.mubr.f32.mxu0 %v1469
  %2084 = vmatmul.mubr.f32.gmra.mxu0 %v1464
  %v2085 = vpop.f32.mrf.mxu0
  %v2086 = vadd.f32 %v2016, %v2085
  %v2087 = vpop.f32.mrf.mxu0
  %2088 = vdwg.mxu0
  %v2089 = vmax.f32 %v2086, 0.0
  %v2090 = vld [vmem:[%s5] sm:$0xff]
  %v2091 = vld [vmem:[%s5 + $0x8] sm:$0xff]
  %v2092 = vld [vmem:[%s5 + $0x10] sm:$0xff]
  %v2093 = vld [vmem:[%s5 + $0x18] sm:$0xff]
  %v2094 = vld [vmem:[%s5 + $0x20] sm:$0xff]
  %v2095 = vld [vmem:[%s5 + $0x28] sm:$0xff]
  %v2096 = vld [vmem:[%s5 + $0x30] sm:$0xff]
  %v2097 = vld [vmem:[%s5 + $0x38] sm:$0xff]
  %v2098 = vld [vmem:[%s6] sm:$0x1]
  %v2100 = vlaneseq
  %v2101 = vshrl.u32 %v2100, 7
  %v2102 = vsub.s32 0, %v2101
  %v2103 = vrot.slane %v2098, %v2102
  %vm2105 = vcmask 523264
  %v2107 = vsel %vm2105, %v2089, 0
  %2109 = vmatprep.subr.mxu0 0.0
  %2110 = vmatpush1.msra.mxu0 0.0
  %2111 = vmatprep.subr.mxu0 0.0
  %2112 = vmatpush1.msra.mxu0 0.0
  %2113 = vmatprep.subr.mxu0 0.0
  %2114 = vmatpush1.msra.mxu0 0.0
  %2115 = vmatprep.subr.mxu0 0.0
  %2116 = vmatpush1.msra.mxu0 0.0
  %2117 = vmatprep.subr.mxu0 0.0
  %2118 = vmatpush1.msra.mxu0 0.0
  %2119 = vmatprep.subr.mxu0 0.0
  %2120 = vmatpush1.msra.mxu0 0.0
  %2121 = vmatprep.subr.mxu0 0.0
  %2122 = vmatpush1.msra.mxu0 0.0
  %2123 = vmatprep.subr.mxu0 0.0
  %2124 = vmatpush1.msra.mxu0 0.0
  %2125 = vmatprep.subr.mxu0 0.0
  %2126 = vmatpush1.msra.mxu0 %v2097
  %2127 = vmatprep.subr.mxu0 0.0
  %2128 = vmatpush1.msra.mxu0 %v2096
  %2129 = vmatprep.subr.mxu0 0.0
  %2130 = vmatpush1.msra.mxu0 %v2095
  %2131 = vmatprep.subr.mxu0 0.0
  %2132 = vmatpush1.msra.mxu0 %v2094
  %2133 = vmatprep.subr.mxu0 0.0
  %2134 = vmatpush1.msra.mxu0 %v2093
  %2135 = vmatprep.subr.mxu0 0.0
  %2136 = vmatpush1.msra.mxu0 %v2092
  %2137 = vmatprep.subr.mxu0 0.0
  %2138 = vmatpush1.msra.mxu0 %v2091
  %2139 = vmatprep.subr.mxu0 0.0
  %2140 = vmatpush1.msra.mxu0 %v2090
  %2141 = vmatprep.subr.mxu0 0.0
  %2142 = vmatpush2.msra.mxu0 0.0
  %2143 = vmatprep.subr.mxu0 0.0
  %2144 = vmatpush2.msra.mxu0 0.0
  %2145 = vmatprep.subr.mxu0 0.0
  %2146 = vmatpush2.msra.mxu0 0.0
  %2147 = vmatprep.subr.mxu0 0.0
  %2148 = vmatpush2.msra.mxu0 0.0
  %2149 = vmatprep.subr.mxu0 0.0
  %2150 = vmatpush2.msra.mxu0 0.0
  %2151 = vmatprep.subr.mxu0 0.0
  %2152 = vmatpush2.msra.mxu0 0.0
  %2153 = vmatprep.subr.mxu0 0.0
  %2154 = vmatpush2.msra.mxu0 0.0
  %2155 = vmatprep.subr.mxu0 0.0
  %2156 = vmatpush2.msra.mxu0 0.0
  %2157 = vmatprep.subr.mxu0 0.0
  %2158 = vmatpush2.msra.mxu0 0.0
  %2159 = vmatprep.subr.mxu0 0.0
  %2160 = vmatpush2.msra.mxu0 0.0
  %2161 = vmatprep.subr.mxu0 0.0
  %2162 = vmatpush2.msra.mxu0 0.0
  %2163 = vmatprep.subr.mxu0 0.0
  %2164 = vmatpush2.msra.mxu0 0.0
  %2165 = vmatprep.subr.mxu0 0.0
  %2166 = vmatpush2.msra.mxu0 0.0
  %2167 = vmatprep.subr.mxu0 0.0
  %2168 = vmatpush2.msra.mxu0 0.0
  %2169 = vmatprep.subr.mxu0 0.0
  %2170 = vmatpush2.msra.mxu0 0.0
  %2171 = vmatprep.subr.mxu0 0.0
  %2172 = vmatpush2.msra.mxu0 0.0
  %2173 = vmatprep.mubr.f32.mxu0 0.0
  %2174 = vmatmul.mubr.f32.gmra.mxu0 %v2107
  %v2175 = vpop.f32.mrf.mxu0
  %v2176 = vadd.f32 %v2103, %v2175
  %v2177 = vpop.f32.mrf.mxu0
  %2178 = vdwg.mxu0
  %vm2179 = vcmask 80896
  %v2180 = vsel %vm2179, %v2176, -inf
  %2181 = vmax.xlane.f32.xlu0 %v2180
  %v2182 = vpop.xlane.xlu0 %2181
  %v2183 = vsub.f32 %v2176, %v2182
  %v2184 = vmul.f32 %v2183, 1.442695
  %v2185 = vpow.pop %v2184
  %v2186 = vsel %vm2179, %v2185, 0.0
  %2187 = vadd.xlane.f32.xlu0 %v2186
  %v2188 = vpop.xlane.xlu0 %2187
  %v2189 = vlog2.pop %v2188
  %v2190 = vmul.f32 %v2189, 0.6931472
  %v2191 = vsub.f32 %v2183, %v2190
  %2192 = vst.msk [vmem:[%s7] sm:$0xff] %vm2179, %v2191
  // Predicated region
  $region30: #{cnn_forward.1} parent=0 // pred_check
    _
  $region31: #{cnn_forward.1} parent=0 // pred_check_branch
    %2194 = sbr.rel (0) target = $region33
  $region32: #{cnn_forward.1} parent=0 // pred_region
    _
  $region33: #{cnn_forward.1} parent=0 // pred_fallthru
    _
  // Predicated region
  $region34: #{cnn_forward.1} parent=0 // pred_check
    _
  $region35: #{cnn_forward.1} parent=0 // pred_check_branch
    %2196 = sbr.rel (0) target = $region37
  $region36: #{cnn_forward.1} parent=0 // pred_region
    _
  $region37: #{cnn_forward.1} parent=0 // pred_fallthru
    _

</llo_original>
